<compile_context>
chip_gen: v7x
topology: tpu7x:2x2x1
jax: 0.10.0
libtpu: 0.0.40
codegen_flags: <defaults>
</compile_context>

<pallas_src>
import functools

import jax
import jax.numpy as jnp
from jax.experimental import pallas as pl
from jax.experimental.pallas import tpu as pltpu

_POS_E_DIM = 64


def _round_up(v, m):
    return ((v + m - 1) // m) * m


# --------------------------------------------------------------------------
# Kernel
# --------------------------------------------------------------------------
def _scorenet_kernel(num_blocks, hidden, unroll,
                     x_ref, ball_ref,
                     wall_ref, bn0s_ref, bn0b_ref, fc0w_ref, fc0b_ref,
                     fc1w_ref, fc1b_ref,
                     bnfs_ref, bnfb_ref, wf_ref, bf_ref,
                     bnos_ref, bnob_ref, wout_ref, bout_ref,
                     out_ref):
    H = hidden
    xt = x_ref[0]                                                   # (dim, TN) bf16

    def block(net, bn0s, bn0b, fc0w, fc0b, fc1w, fc1b, cc):
        a0 = jnp.maximum(net * bn0s + bn0b, 0.0)                    # bn_0 + ReLU
        h = jnp.dot(fc0w, a0.astype(jnp.bfloat16),
                    preferred_element_type=jnp.float32) + fc0b      # fc_0 (bn_1 folded)
        h = jnp.maximum(h, 0.0)                                     # ReLU
        dx = jnp.dot(fc1w, h.astype(jnp.bfloat16),
                     preferred_element_type=jnp.float32) + fc1b     # fc_1
        return net + dx + cc                                        # shortcut identity

    if unroll:
        # One stacked matmul produces conv_p and every block's fc_c rows
        # (pos_embedding folded host-side, so K == dim).
        pc = (jnp.dot(wall_ref[...], xt, preferred_element_type=jnp.float32)
              + ball_ref[...])                                      # ((nb+1)*H, TN)
        net = pc[:H]
        for i in range(num_blocks):
            net = block(net, bn0s_ref[i], bn0b_ref[i],
                        fc0w_ref[i], fc0b_ref[i], fc1w_ref[i], fc1b_ref[i],
                        pc[(i + 1) * H:(i + 2) * H])
    else:
        # fori_loop path: bounded live ranges for large num_blocks; per-block
        # cc matmul is K=dim (trivial), sliced dynamically from the stacked
        # weight / bias refs.
        net = (jnp.dot(wall_ref[pl.ds(0, H), :], xt,
                       preferred_element_type=jnp.float32)
               + ball_ref[pl.ds(0, H), :])

        def body(i, net):
            off = pl.multiple_of((i + 1) * H, H)
            cc = (jnp.dot(wall_ref[pl.ds(off, H), :], xt,
                          preferred_element_type=jnp.float32)
                  + ball_ref[pl.ds(off, H), :])
            return block(net, bn0s_ref[i], bn0b_ref[i],
                         fc0w_ref[i], fc0b_ref[i], fc1w_ref[i], fc1b_ref[i],
                         cc)

        net = jax.lax.fori_loop(0, num_blocks, body, net)

    # ---- fusion_weight head: BN -> ReLU -> Conv1d(H,1,1) -> Sigmoid ---------
    fh = jnp.maximum(net * bnfs_ref[...] + bnfb_ref[...], 0.0)
    wlog = (jnp.dot(wf_ref[...], fh.astype(jnp.bfloat16),
                    preferred_element_type=jnp.float32) + bf_ref[...])   # (1, TN)

    # ---- output head: bn_out -> ReLU -> conv_out ----------------------------
    oh = jnp.maximum(net * bnos_ref[...] + bnob_ref[...], 0.0)
    o = (jnp.dot(wout_ref[...], oh.astype(jnp.bfloat16),
                 preferred_element_type=jnp.float32) + bout_ref[...])    # (out_dim, TN)

    # Single lane-dense writeback: rows [0:out_dim] = out, row [out_dim] = w.
    out_ref[0] = jnp.concatenate([o, jax.nn.sigmoid(wlog)], axis=0)


# --------------------------------------------------------------------------
# Parameters (PyTorch-equivalent raw params + prep for the kernel)
# --------------------------------------------------------------------------
def _bn_eval_affine(c):
    """PyTorch BatchNorm1d defaults (gamma=1, beta=0, mean=0, var=1), eval mode."""
    eps = 1e-5
    gamma = jnp.ones((c, 1), jnp.float32)
    beta = jnp.zeros((c, 1), jnp.float32)
    mean = jnp.zeros((c, 1), jnp.float32)
    var = jnp.ones((c, 1), jnp.float32)
    scale = gamma / jnp.sqrt(var + eps)
    shift = beta - mean * scale
    return scale, shift


def init_params(key, z_dim, dim, out_dim, hidden, hidden_h, num_blocks,
                pos_e_dim=_POS_E_DIM):
    c_dim = z_dim + pos_e_dim
    keys = iter(jax.random.split(key, 64))

    def unif(shape, fan_in):
        bound = 1.0 / float(fan_in) ** 0.5
        return jax.random.uniform(next(keys), shape, jnp.float32, -bound, bound)

    p = {}
    p["wpe"] = unif((pos_e_dim, dim), dim)          # pos_embedding: Linear(dim, 64)
    p["bpe"] = unif((pos_e_dim, 1), dim)
    p["wcp"] = unif((hidden, c_dim), c_dim)         # conv_p: Conv1d(c_dim, hidden, 1)
    p["bcp"] = unif((hidden, 1), c_dim)

    bn_h_s, bn_h_b = _bn_eval_affine(hidden)
    bn_hh_s, bn_hh_b = _bn_eval_affine(hidden_h)
    p["bn0s"] = jnp.stack([bn_h_s] * num_blocks)
    p["bn0b"] = jnp.stack([bn_h_b] * num_blocks)
    p["bn1s"] = jnp.stack([bn_hh_s] * num_blocks)
    p["bn1b"] = jnp.stack([bn_hh_b] * num_blocks)

    fc0w, fc0b, fc1w, fc1b, fccw, fccb = [], [], [], [], [], []
    for _ in range(num_blocks):
        fc0w.append(unif((hidden_h, hidden), hidden))
        fc0b.append(unif((hidden_h, 1), hidden))
        fc1w.append(jnp.zeros((hidden, hidden_h), jnp.float32))  # nn.init.zeros_
        fc1b.append(unif((hidden, 1), hidden_h))
        fccw.append(unif((hidden, c_dim), c_dim))
        fccb.append(unif((hidden, 1), c_dim))
    p["fc0w"], p["fc0b"] = jnp.stack(fc0w), jnp.stack(fc0b)
    p["fc1w"], p["fc1b"] = jnp.stack(fc1w), jnp.stack(fc1b)
    p["fccw"], p["fccb"] = jnp.stack(fccw), jnp.stack(fccb)

    p["bnfs"], p["bnfb"] = _bn_eval_affine(hidden)   # fusion_weight head
    p["wf"] = unif((1, hidden), hidden)
    p["bf"] = unif((1, 1), hidden)

    p["bnos"], p["bnob"] = _bn_eval_affine(hidden)   # output head
    p["wout"] = unif((out_dim, hidden), hidden)
    p["bout"] = unif((out_dim, 1), hidden)
    return p


_KERNEL_PARAM_ORDER = ["wall", "bn0s", "bn0b", "fc0w", "fc0b", "fc1w", "fc1b",
                       "bnfs", "bnfb", "wf", "bf", "bnos", "bnob", "wout", "bout"]


def _prepare_params(params, pos_e_dim=_POS_E_DIM):
    """Stack conv_p+fc_c, fold pos_embedding & eval bn_1, cast matmul weights."""
    bf16, f32 = jnp.bfloat16, jnp.float32
    wcp, fccw = params["wcp"], params["fccw"]
    nb, H = fccw.shape[0], wcp.shape[0]

    # Stacked positional / latent halves of conv_p and all fc_c: (C, *)
    w_pos = jnp.concatenate(
        [wcp[:, :pos_e_dim], fccw[:, :, :pos_e_dim].reshape(nb * H, pos_e_dim)], 0)
    w_z = jnp.concatenate(
        [wcp[:, pos_e_dim:], fccw[:, :, pos_e_dim:].reshape(nb * H, -1)], 0)
    # Fold the linear pos_embedding: W_pos @ (wpe x + bpe) == (W_pos wpe) x + W_pos bpe
    wall = jnp.dot(w_pos, params["wpe"])                               # (C, dim) f32
    bconst = (jnp.dot(w_pos, params["bpe"])
              + jnp.concatenate([params["bcp"],
                                 params["fccb"].reshape(nb * H, 1)], 0))  # (C, 1)

    prep = {
        "wall": wall.astype(bf16),
        "bn0s": params["bn0s"].astype(f32),
        "bn0b": params["bn0b"].astype(f32),
        # eval-mode bn_1 folded into fc_0 (scale rows, shift bias)
        "fc0w": (params["fc0w"] * params["bn1s"]).astype(bf16),
        "fc0b": (params["fc0b"] * params["bn1s"] + params["bn1b"]).astype(f32),
        "fc1w": params["fc1w"].astype(bf16),
        "fc1b": params["fc1b"].astype(f32),
        "bnfs": params["bnfs"].astype(f32),
        "bnfb": params["bnfb"].astype(f32),
        "wf": params["wf"].astype(bf16),
        "bf": params["bf"].astype(f32),
        "bnos": params["bnos"].astype(f32),
        "bnob": params["bnob"].astype(f32),
        "wout": params["wout"].astype(bf16),
        "bout": params["bout"].astype(f32),
    }
    return prep, w_z.astype(f32), bconst.astype(f32)


# --------------------------------------------------------------------------
# VMEM sizing helpers
# --------------------------------------------------------------------------
def _padded_bytes(shape, dtype):
    itemsize = jnp.dtype(dtype).itemsize
    sub = 16 if itemsize == 2 else 8
    lead = 1
    for d in shape[:-2]:
        lead *= int(d)
    r = _round_up(int(shape[-2]), sub)
    c = _round_up(int(shape[-1]), 128)
    return lead * r * c * itemsize


def _vmem_estimate(tn, dim, H, hidden_h, out_dim, num_blocks, param_list, unroll):
    C = (num_blocks + 1) * H
    params = sum(_padded_bytes(a.shape, a.dtype) for a in param_list)
    x_tile = _padded_bytes((dim, tn), jnp.bfloat16)
    o_tile = _padded_bytes((out_dim + 1, tn), jnp.float32)
    bias = _padded_bytes((C, 1), jnp.float32)
    live_rows = (C if unroll else 2 * H) + 4 * H + hidden_h + out_dim + 1 + 16
    act = live_rows * _round_up(tn, 128) * 4
    # pipelined blocks (inputs/outputs/params) are double-buffered by default
    return 2 * (params + x_tile + o_tile + bias) + act


# --------------------------------------------------------------------------
# Wrapper
# --------------------------------------------------------------------------
def scorenet_forward(x, c, params, num_blocks, *, tile_n=None, unroll_blocks=4):
    """x: (B, N, dim) f32, c: (B, z_dim) f32 -> (out (B,N,out_dim), w (B,N,1))."""
    B, n_pts, dim = x.shape
    H = params["wcp"].shape[0]
    hidden_h = params["fc0w"].shape[1]
    out_dim = params["wout"].shape[0]
    C = (num_blocks + 1) * H
    unroll = num_blocks <= unroll_blocks

    prep, w_z, bconst = _prepare_params(params)
    param_list = [prep[k] for k in _KERNEL_PARAM_ORDER]

    # Per-batch bias column for the stacked conv_p/fc_c matmul: latent halves
    # of the weights + pos-embedding bias + conv biases (computed once).
    c32 = c.astype(jnp.float32)
    ball = bconst[None] + jnp.einsum("cz,bz->bc", w_z, c32)[..., None]  # (B, C, 1)

    # Generation-aware VMEM budget (v5e/v6e: 128 MiB, v7x: 64 MiB per core).
    try:
        vmem_cap = int(pltpu.get_tpu_info().vmem_capacity_bytes)
        if vmem_cap <= 0:
            vmem_cap = 64 << 20
    except Exception:
        vmem_cap = 64 << 20
    budget = max(int(0.75 * vmem_cap), 32 << 20)

    # Lane-dense N tiling: pick the largest tile that fits the budget, then
    # split N so padding stays below one 128-lane chunk per tile.
    n_128 = _round_up(n_pts, 128)
    if tile_n is None:
        tile_n = 2048 if budget >= (72 << 20) else 512
    tile = max(128, min(_round_up(int(tile_n), 128), n_128))

    def est(t):
        return _vmem_estimate(t, dim, H, hidden_h, out_dim, num_blocks,
                              param_list, unroll)

    while tile > 256 and est(tile) > budget:
        tile -= 128
    num_tiles = pl.cdiv(n_128, tile)
    if B * num_tiles < 2 and n_128 >= 256:
        num_tiles = 2          # >=2 grid steps: both v7x TCs / pipeline overlap
    TN = _round_up(pl.cdiv(n_128, num_tiles), 128)
    n_total = TN * num_tiles

    x_t = jnp.transpose(x, (0, 2, 1)).astype(jnp.bfloat16)   # (B, dim, N) bf16
    if n_total != n_pts:
        x_t = jnp.pad(x_t, ((0, 0), (0, 0), (0, n_total - n_pts)))

    vmem_limit = int(min(max(2 * est(TN) + (4 << 20), 32 << 20), budget))

    param_bytes = sum(int(a.size) * a.dtype.itemsize for a in param_list)
    flops = 2 * B * n_total * (C * dim
                               + num_blocks * 2 * hidden_h * H
                               + H * (out_dim + 1))
    bytes_accessed = int(x_t.size * 2 + B * n_total * (out_dim + 1) * 4
                         + B * C * 4 + param_bytes)
    cost = pl.CostEstimate(flops=flops, transcendentals=B * n_total,
                           bytes_accessed=bytes_accessed)

    def rep_spec(arr):
        nd = arr.ndim
        # TODO(synk): single-buffer these loop-invariant blocks via
        #             pipeline_mode=pl.Buffered(1) once verified on target jax.
        return pl.BlockSpec(arr.shape, lambda b, j, _nd=nd: (0,) * _nd)

    kernel = functools.partial(_scorenet_kernel, num_blocks, H, unroll)

    merged = pl.pallas_call(
        kernel,
        out_shape=jax.ShapeDtypeStruct((B, out_dim + 1, n_total), jnp.float32),
        grid=(B, num_tiles),
        in_specs=[pl.BlockSpec((1, dim, TN), lambda b, j: (b, 0, j)),
                  pl.BlockSpec((None, C, 1), lambda b, j: (b, 0, 0))]
                 + [rep_spec(a) for a in param_list],
        out_specs=pl.BlockSpec((1, out_dim + 1, TN), lambda b, j: (b, 0, j)),
        compiler_params=pltpu.CompilerParams(
            dimension_semantics=("parallel", "parallel"),
            vmem_limit_bytes=vmem_limit),
        cost_estimate=cost,
    )(x_t, ball, *param_list)

    out = jnp.transpose(merged[:, :out_dim, :n_pts], (0, 2, 1))   # (B, N, out_dim)
    w = jnp.transpose(merged[:, out_dim:, :n_pts], (0, 2, 1))     # (B, N, 1)
    return out, w


# --------------------------------------------------------------------------
# Pure-JAX reference (f32, unfused) for correctness checking
# --------------------------------------------------------------------------
def scorenet_reference(x, c, params, num_blocks):
    B, N, _ = x.shape
    p = jnp.einsum("od,bnd->bon", params["wpe"], x) + params["bpe"][None]
    c_exp = jnp.broadcast_to(c[:, :, None], (B, c.shape[1], N))
    c_xyz = jnp.concatenate([p, c_exp], axis=1)

    def conv(w, b, h):
        return jnp.einsum("oi,bin->bon", w, h) + b[None]

    net = conv(params["wcp"], params["bcp"], c_xyz)
    for i in range(num_blocks):
        h = jax.nn.relu(net * params["bn0s"][i][None] + params["bn0b"][i][None])
        h = conv(params["fc0w"][i], params["fc0b"][i], h)
        h = jax.nn.relu(h * params["bn1s"][i][None] + params["bn1b"][i][None])
        dx = conv(params["fc1w"][i], params["fc1b"][i], h)
        cc = conv(params["fccw"][i], params["fccb"][i], c_xyz)
        net = net + dx + cc
    fh = jax.nn.relu(net * params["bnfs"][None] + params["bnfb"][None])
    w = jax.nn.sigmoid(conv(params["wf"], params["bf"], fh))
    oh = jax.nn.relu(net * params["bnos"][None] + params["bnob"][None])
    out = conv(params["wout"], params["bout"], oh)
    return jnp.transpose(out, (0, 2, 1)), jnp.transpose(w, (0, 2, 1))


if __name__ == "__main__":
    def run_case(seed, B, n_pts, dim, z_dim, hidden, hidden_h, out_dim,
                 num_blocks, tile_n=None):
        key = jax.random.PRNGKey(seed)
        kx, kc, kp, k1, k2, k3 = jax.random.split(key, 6)
        x = jax.random.normal(kx, (B, n_pts, dim), jnp.float32)
        c = jax.random.normal(kc, (B, z_dim), jnp.float32)
        params = init_params(kp, z_dim, dim, out_dim, hidden, hidden_h,
                             num_blocks)
        # fc_1 is zero-initialised in the module; perturb it (and the BN
        # affines) so the residual / normalisation / bn-fold paths are
        # actually exercised by the correctness check.
        params["fc1w"] = 0.05 * jax.random.normal(k1, params["fc1w"].shape,
                                                  jnp.float32)
        for i, name in enumerate(("bn0s", "bn1s", "bnfs", "bnos")):
            kk = jax.random.fold_in(k2, i)
            params[name] = params[name] * (
                1.0 + 0.1 * jax.random.normal(kk, params[name].shape))
        for i, name in enumerate(("bn0b", "bn1b", "bnfb", "bnob")):
            kk = jax.random.fold_in(k3, i)
            params[name] = params[name] + 0.1 * jax.random.normal(
                kk, params[name].shape)

        fwd = jax.jit(functools.partial(scorenet_forward,
                                        num_blocks=num_blocks, tile_n=tile_n))
        out, w = fwd(x, c, params)
        jax.block_until_ready((out, w))

        out_ref, w_ref = scorenet_reference(x, c, params, num_blocks)
        assert out.shape == (B, n_pts, out_dim), out.shape
        assert w.shape == (B, n_pts, 1), w.shape
        assert bool(jnp.all(jnp.isfinite(out))) and bool(jnp.all(jnp.isfinite(w)))
        assert bool(jnp.all((w >= 0.0) & (w <= 1.0)))
        tol = 3e-2 * (1.0 + float(jnp.max(jnp.abs(out_ref))))
        err_o = float(jnp.max(jnp.abs(out - out_ref)))
        err_w = float(jnp.max(jnp.abs(w - w_ref)))
        assert err_o < tol, (err_o, tol)
        assert err_w < 3e-2, err_w

    # Unrolled-block path, explicit multi-tile N.
    run_case(0, B=2, n_pts=384, dim=3, z_dim=8, hidden=32, hidden_h=32,
             out_dim=3, num_blocks=2, tile_n=256)
    # fori_loop path (num_blocks > 4), ragged N, B=1 forces a 2-way N split.
    run_case(1, B=1, n_pts=300, dim=3, z_dim=4, hidden=32, hidden_h=16,
             out_dim=3, num_blocks=6)
    print("KERNEL_OK")
</pallas_src>

<mosaic_0001>
module attributes {stable_mosaic.version = 11 : i64} {
  func.func @_scorenet_kernel(%arg0: i32, %arg1: i32, %arg2: memref<1x3x256xbf16, #tpu.memory_space<vmem>>, %arg3: memref<1x96x1xf32, #tpu.memory_space<vmem>>, %arg4: memref<96x3xbf16, #tpu.memory_space<vmem>>, %arg5: memref<2x32x1xf32, #tpu.memory_space<vmem>>, %arg6: memref<2x32x1xf32, #tpu.memory_space<vmem>>, %arg7: memref<2x32x32xbf16, #tpu.memory_space<vmem>>, %arg8: memref<2x32x1xf32, #tpu.memory_space<vmem>>, %arg9: memref<2x32x32xbf16, #tpu.memory_space<vmem>>, %arg10: memref<2x32x1xf32, #tpu.memory_space<vmem>>, %arg11: memref<32x1xf32, #tpu.memory_space<vmem>>, %arg12: memref<32x1xf32, #tpu.memory_space<vmem>>, %arg13: memref<1x32xbf16, #tpu.memory_space<vmem>>, %arg14: memref<1x1xf32, #tpu.memory_space<vmem>>, %arg15: memref<32x1xf32, #tpu.memory_space<vmem>>, %arg16: memref<32x1xf32, #tpu.memory_space<vmem>>, %arg17: memref<3x32xbf16, #tpu.memory_space<vmem>>, %arg18: memref<3x1xf32, #tpu.memory_space<vmem>>, %arg19: memref<1x4x256xf32, #tpu.memory_space<vmem>>) attributes {dimension_semantics = [#tpu.dimension_semantics<parallel>, #tpu.dimension_semantics<parallel>], iteration_bounds = array<i64: 2, 2>, scalar_prefetch = 0 : i64, scratch_operands = 0 : i64, tpu.core_type = #tpu.core_type<tc>, window_params = [{transform_indices = @transform_0, window_bounds = array<i64: 1, 3, 256>}, {transform_indices = @transform_1, window_bounds = array<i64: 1, 96, 1>}, {pipeline_mode = #tpu.pipeline_mode<synchronous>, transform_indices = @transform_2, window_bounds = array<i64: 96, 3>}, {pipeline_mode = #tpu.pipeline_mode<synchronous>, transform_indices = @transform_3, window_bounds = array<i64: 2, 32, 1>}, {pipeline_mode = #tpu.pipeline_mode<synchronous>, transform_indices = @transform_4, window_bounds = array<i64: 2, 32, 1>}, {pipeline_mode = #tpu.pipeline_mode<synchronous>, transform_indices = @transform_5, window_bounds = array<i64: 2, 32, 32>}, {pipeline_mode = #tpu.pipeline_mode<synchronous>, transform_indices = @transform_6, window_bounds = array<i64: 2, 32, 1>}, {pipeline_mode = #tpu.pipeline_mode<synchronous>, transform_indices = @transform_7, window_bounds = array<i64: 2, 32, 32>}, {pipeline_mode = #tpu.pipeline_mode<synchronous>, transform_indices = @transform_8, window_bounds = array<i64: 2, 32, 1>}, {pipeline_mode = #tpu.pipeline_mode<synchronous>, transform_indices = @transform_9, window_bounds = array<i64: 32, 1>}, {pipeline_mode = #tpu.pipeline_mode<synchronous>, transform_indices = @transform_10, window_bounds = array<i64: 32, 1>}, {pipeline_mode = #tpu.pipeline_mode<synchronous>, transform_indices = @transform_11, window_bounds = array<i64: 1, 32>}, {pipeline_mode = #tpu.pipeline_mode<synchronous>, transform_indices = @transform_12, window_bounds = array<i64: 1, 1>}, {pipeline_mode = #tpu.pipeline_mode<synchronous>, transform_indices = @transform_13, window_bounds = array<i64: 32, 1>}, {pipeline_mode = #tpu.pipeline_mode<synchronous>, transform_indices = @transform_14, window_bounds = array<i64: 32, 1>}, {pipeline_mode = #tpu.pipeline_mode<synchronous>, transform_indices = @transform_15, window_bounds = array<i64: 3, 32>}, {pipeline_mode = #tpu.pipeline_mode<synchronous>, transform_indices = @transform_16, window_bounds = array<i64: 3, 1>}, {transform_indices = @transform_17, window_bounds = array<i64: 1, 4, 256>}]} {
    %c0 = arith.constant 0 : index
    %c0_0 = arith.constant 0 : index
    %c0_1 = arith.constant 0 : index
    %0 = vector.load %arg2[%c0, %c0_0, %c0_1] : memref<1x3x256xbf16, #tpu.memory_space<vmem>>, vector<1x3x256xbf16>
    %1 = vector.shape_cast %0 : vector<1x3x256xbf16> to vector<3x256xbf16>
    %c0_2 = arith.constant 0 : index
    %c0_3 = arith.constant 0 : index
    %2 = vector.load %arg4[%c0_2, %c0_3] : memref<96x3xbf16, #tpu.memory_space<vmem>>, vector<96x3xbf16>
    %cst = arith.constant dense<0.000000e+00> : vector<96x256xf32>
    %3 = tpu.matmul %2, %1, %cst {dimension_numbers = #tpu.dot_dimension_numbers<[1], [0], [0], [1], [0, 0, 1, 1], [], []>} : vector<96x3xbf16>, vector<3x256xbf16>, vector<96x256xf32> -> vector<96x256xf32>
    %c0_4 = arith.constant 0 : index
    %c0_5 = arith.constant 0 : index
    %c0_6 = arith.constant 0 : index
    %4 = vector.load %arg3[%c0_4, %c0_5, %c0_6] : memref<1x96x1xf32, #tpu.memory_space<vmem>>, vector<1x96x1xf32>
    %5 = vector.shape_cast %4 : vector<1x96x1xf32> to vector<96x1xf32>
    %6 = vector.broadcast %5 : vector<96x1xf32> to vector<96x256xf32>
    %7 = arith.addf %3, %6 : vector<96x256xf32>
    %8 = vector.extract_strided_slice %7 {offsets = [0, 0], sizes = [32, 256], strides = [1, 1]} : vector<96x256xf32> to vector<32x256xf32>
    %c0_7 = arith.constant 0 : index
    %c0_8 = arith.constant 0 : index
    %c0_9 = arith.constant 0 : index
    %9 = vector.load %arg5[%c0_7, %c0_8, %c0_9] : memref<2x32x1xf32, #tpu.memory_space<vmem>>, vector<1x32x1xf32>
    %10 = vector.shape_cast %9 : vector<1x32x1xf32> to vector<32x1xf32>
    %c0_10 = arith.constant 0 : index
    %c0_11 = arith.constant 0 : index
    %c0_12 = arith.constant 0 : index
    %11 = vector.load %arg6[%c0_10, %c0_11, %c0_12] : memref<2x32x1xf32, #tpu.memory_space<vmem>>, vector<1x32x1xf32>
    %12 = vector.shape_cast %11 : vector<1x32x1xf32> to vector<32x1xf32>
    %c0_13 = arith.constant 0 : index
    %c0_14 = arith.constant 0 : index
    %c0_15 = arith.constant 0 : index
    %13 = vector.load %arg7[%c0_13, %c0_14, %c0_15] : memref<2x32x32xbf16, #tpu.memory_space<vmem>>, vector<1x32x32xbf16>
    %14 = vector.shape_cast %13 : vector<1x32x32xbf16> to vector<32x32xbf16>
    %c0_16 = arith.constant 0 : index
    %c0_17 = arith.constant 0 : index
    %c0_18 = arith.constant 0 : index
    %15 = vector.load %arg8[%c0_16, %c0_17, %c0_18] : memref<2x32x1xf32, #tpu.memory_space<vmem>>, vector<1x32x1xf32>
    %16 = vector.shape_cast %15 : vector<1x32x1xf32> to vector<32x1xf32>
    %c0_19 = arith.constant 0 : index
    %c0_20 = arith.constant 0 : index
    %c0_21 = arith.constant 0 : index
    %17 = vector.load %arg9[%c0_19, %c0_20, %c0_21] : memref<2x32x32xbf16, #tpu.memory_space<vmem>>, vector<1x32x32xbf16>
    %18 = vector.shape_cast %17 : vector<1x32x32xbf16> to vector<32x32xbf16>
    %c0_22 = arith.constant 0 : index
    %c0_23 = arith.constant 0 : index
    %c0_24 = arith.constant 0 : index
    %19 = vector.load %arg10[%c0_22, %c0_23, %c0_24] : memref<2x32x1xf32, #tpu.memory_space<vmem>>, vector<1x32x1xf32>
    %20 = vector.shape_cast %19 : vector<1x32x1xf32> to vector<32x1xf32>
    %21 = vector.extract_strided_slice %7 {offsets = [32, 0], sizes = [32, 256], strides = [1, 1]} : vector<96x256xf32> to vector<32x256xf32>
    %22 = vector.broadcast %10 : vector<32x1xf32> to vector<32x256xf32>
    %23 = arith.mulf %8, %22 : vector<32x256xf32>
    %24 = vector.broadcast %12 : vector<32x1xf32> to vector<32x256xf32>
    %25 = arith.addf %23, %24 : vector<32x256xf32>
    %cst_25 = arith.constant 0.000000e+00 : f32
    %26 = vector.broadcast %cst_25 : f32 to vector<32x256xf32>
    %27 = arith.maximumf %25, %26 : vector<32x256xf32>
    %28 = arith.truncf %27 : vector<32x256xf32> to vector<32x256xbf16>
    %cst_26 = arith.constant dense<0.000000e+00> : vector<32x256xf32>
    %29 = tpu.matmul %14, %28, %cst_26 {dimension_numbers = #tpu.dot_dimension_numbers<[1], [0], [0], [1], [0, 0, 1, 1], [], []>} : vector<32x32xbf16>, vector<32x256xbf16>, vector<32x256xf32> -> vector<32x256xf32>
    %30 = vector.broadcast %16 : vector<32x1xf32> to vector<32x256xf32>
    %31 = arith.addf %29, %30 : vector<32x256xf32>
    %cst_27 = arith.constant 0.000000e+00 : f32
    %32 = vector.broadcast %cst_27 : f32 to vector<32x256xf32>
    %33 = arith.maximumf %31, %32 : vector<32x256xf32>
    %34 = arith.truncf %33 : vector<32x256xf32> to vector<32x256xbf16>
    %cst_28 = arith.constant dense<0.000000e+00> : vector<32x256xf32>
    %35 = tpu.matmul %18, %34, %cst_28 {dimension_numbers = #tpu.dot_dimension_numbers<[1], [0], [0], [1], [0, 0, 1, 1], [], []>} : vector<32x32xbf16>, vector<32x256xbf16>, vector<32x256xf32> -> vector<32x256xf32>
    %36 = vector.broadcast %20 : vector<32x1xf32> to vector<32x256xf32>
    %37 = arith.addf %35, %36 : vector<32x256xf32>
    %38 = arith.addf %8, %37 : vector<32x256xf32>
    %39 = arith.addf %38, %21 : vector<32x256xf32>
    %c1 = arith.constant 1 : index
    %c0_29 = arith.constant 0 : index
    %c0_30 = arith.constant 0 : index
    %40 = vector.load %arg5[%c1, %c0_29, %c0_30] : memref<2x32x1xf32, #tpu.memory_space<vmem>>, vector<1x32x1xf32>
    %41 = vector.shape_cast %40 : vector<1x32x1xf32> to vector<32x1xf32>
    %c1_31 = arith.constant 1 : index
    %c0_32 = arith.constant 0 : index
    %c0_33 = arith.constant 0 : index
    %42 = vector.load %arg6[%c1_31, %c0_32, %c0_33] : memref<2x32x1xf32, #tpu.memory_space<vmem>>, vector<1x32x1xf32>
    %43 = vector.shape_cast %42 : vector<1x32x1xf32> to vector<32x1xf32>
    %c1_34 = arith.constant 1 : index
    %c0_35 = arith.constant 0 : index
    %c0_36 = arith.constant 0 : index
    %44 = vector.load %arg7[%c1_34, %c0_35, %c0_36] : memref<2x32x32xbf16, #tpu.memory_space<vmem>>, vector<1x32x32xbf16>
    %45 = vector.shape_cast %44 : vector<1x32x32xbf16> to vector<32x32xbf16>
    %c1_37 = arith.constant 1 : index
    %c0_38 = arith.constant 0 : index
    %c0_39 = arith.constant 0 : index
    %46 = vector.load %arg8[%c1_37, %c0_38, %c0_39] : memref<2x32x1xf32, #tpu.memory_space<vmem>>, vector<1x32x1xf32>
    %47 = vector.shape_cast %46 : vector<1x32x1xf32> to vector<32x1xf32>
    %c1_40 = arith.constant 1 : index
    %c0_41 = arith.constant 0 : index
    %c0_42 = arith.constant 0 : index
    %48 = vector.load %arg9[%c1_40, %c0_41, %c0_42] : memref<2x32x32xbf16, #tpu.memory_space<vmem>>, vector<1x32x32xbf16>
    %49 = vector.shape_cast %48 : vector<1x32x32xbf16> to vector<32x32xbf16>
    %c1_43 = arith.constant 1 : index
    %c0_44 = arith.constant 0 : index
    %c0_45 = arith.constant 0 : index
    %50 = vector.load %arg10[%c1_43, %c0_44, %c0_45] : memref<2x32x1xf32, #tpu.memory_space<vmem>>, vector<1x32x1xf32>
    %51 = vector.shape_cast %50 : vector<1x32x1xf32> to vector<32x1xf32>
    %52 = vector.extract_strided_slice %7 {offsets = [64, 0], sizes = [32, 256], strides = [1, 1]} : vector<96x256xf32> to vector<32x256xf32>
    %53 = vector.broadcast %41 : vector<32x1xf32> to vector<32x256xf32>
    %54 = arith.mulf %39, %53 : vector<32x256xf32>
    %55 = vector.broadcast %43 : vector<32x1xf32> to vector<32x256xf32>
    %56 = arith.addf %54, %55 : vector<32x256xf32>
    %cst_46 = arith.constant 0.000000e+00 : f32
    %57 = vector.broadcast %cst_46 : f32 to vector<32x256xf32>
    %58 = arith.maximumf %56, %57 : vector<32x256xf32>
    %59 = arith.truncf %58 : vector<32x256xf32> to vector<32x256xbf16>
    %cst_47 = arith.constant dense<0.000000e+00> : vector<32x256xf32>
    %60 = tpu.matmul %45, %59, %cst_47 {dimension_numbers = #tpu.dot_dimension_numbers<[1], [0], [0], [1], [0, 0, 1, 1], [], []>} : vector<32x32xbf16>, vector<32x256xbf16>, vector<32x256xf32> -> vector<32x256xf32>
    %61 = vector.broadcast %47 : vector<32x1xf32> to vector<32x256xf32>
    %62 = arith.addf %60, %61 : vector<32x256xf32>
    %cst_48 = arith.constant 0.000000e+00 : f32
    %63 = vector.broadcast %cst_48 : f32 to vector<32x256xf32>
    %64 = arith.maximumf %62, %63 : vector<32x256xf32>
    %65 = arith.truncf %64 : vector<32x256xf32> to vector<32x256xbf16>
    %cst_49 = arith.constant dense<0.000000e+00> : vector<32x256xf32>
    %66 = tpu.matmul %49, %65, %cst_49 {dimension_numbers = #tpu.dot_dimension_numbers<[1], [0], [0], [1], [0, 0, 1, 1], [], []>} : vector<32x32xbf16>, vector<32x256xbf16>, vector<32x256xf32> -> vector<32x256xf32>
    %67 = vector.broadcast %51 : vector<32x1xf32> to vector<32x256xf32>
    %68 = arith.addf %66, %67 : vector<32x256xf32>
    %69 = arith.addf %39, %68 : vector<32x256xf32>
    %70 = arith.addf %69, %52 : vector<32x256xf32>
    %c0_50 = arith.constant 0 : index
    %c0_51 = arith.constant 0 : index
    %71 = vector.load %arg11[%c0_50, %c0_51] : memref<32x1xf32, #tpu.memory_space<vmem>>, vector<32x1xf32>
    %72 = vector.broadcast %71 : vector<32x1xf32> to vector<32x256xf32>
    %73 = arith.mulf %70, %72 : vector<32x256xf32>
    %c0_52 = arith.constant 0 : index
    %c0_53 = arith.constant 0 : index
    %74 = vector.load %arg12[%c0_52, %c0_53] : memref<32x1xf32, #tpu.memory_space<vmem>>, vector<32x1xf32>
    %75 = vector.broadcast %74 : vector<32x1xf32> to vector<32x256xf32>
    %76 = arith.addf %73, %75 : vector<32x256xf32>
    %cst_54 = arith.constant 0.000000e+00 : f32
    %77 = vector.broadcast %cst_54 : f32 to vector<32x256xf32>
    %78 = arith.maximumf %76, %77 : vector<32x256xf32>
    %c0_55 = arith.constant 0 : index
    %c0_56 = arith.constant 0 : index
    %79 = vector.load %arg13[%c0_55, %c0_56] : memref<1x32xbf16, #tpu.memory_space<vmem>>, vector<1x32xbf16>
    %80 = arith.truncf %78 : vector<32x256xf32> to vector<32x256xbf16>
    %cst_57 = arith.constant dense<0.000000e+00> : vector<1x256xf32>
    %81 = tpu.matmul %79, %80, %cst_57 {dimension_numbers = #tpu.dot_dimension_numbers<[1], [0], [0], [1], [0, 0, 1, 1], [], []>} : vector<1x32xbf16>, vector<32x256xbf16>, vector<1x256xf32> -> vector<1x256xf32>
    %c0_58 = arith.constant 0 : index
    %c0_59 = arith.constant 0 : index
    %82 = vector.load %arg14[%c0_58, %c0_59] : memref<1x1xf32, #tpu.memory_space<vmem>>, vector<1x1xf32>
    %83 = vector.broadcast %82 : vector<1x1xf32> to vector<1x256xf32>
    %84 = arith.addf %81, %83 : vector<1x256xf32>
    %c0_60 = arith.constant 0 : index
    %c0_61 = arith.constant 0 : index
    %85 = vector.load %arg15[%c0_60, %c0_61] : memref<32x1xf32, #tpu.memory_space<vmem>>, vector<32x1xf32>
    %86 = vector.broadcast %85 : vector<32x1xf32> to vector<32x256xf32>
    %87 = arith.mulf %70, %86 : vector<32x256xf32>
    %c0_62 = arith.constant 0 : index
    %c0_63 = arith.constant 0 : index
    %88 = vector.load %arg16[%c0_62, %c0_63] : memref<32x1xf32, #tpu.memory_space<vmem>>, vector<32x1xf32>
    %89 = vector.broadcast %88 : vector<32x1xf32> to vector<32x256xf32>
    %90 = arith.addf %87, %89 : vector<32x256xf32>
    %cst_64 = arith.constant 0.000000e+00 : f32
    %91 = vector.broadcast %cst_64 : f32 to vector<32x256xf32>
    %92 = arith.maximumf %90, %91 : vector<32x256xf32>
    %c0_65 = arith.constant 0 : index
    %c0_66 = arith.constant 0 : index
    %93 = vector.load %arg17[%c0_65, %c0_66] : memref<3x32xbf16, #tpu.memory_space<vmem>>, vector<3x32xbf16>
    %94 = arith.truncf %92 : vector<32x256xf32> to vector<32x256xbf16>
    %cst_67 = arith.constant dense<0.000000e+00> : vector<3x256xf32>
    %95 = tpu.matmul %93, %94, %cst_67 {dimension_numbers = #tpu.dot_dimension_numbers<[1], [0], [0], [1], [0, 0, 1, 1], [], []>} : vector<3x32xbf16>, vector<32x256xbf16>, vector<3x256xf32> -> vector<3x256xf32>
    %c0_68 = arith.constant 0 : index
    %c0_69 = arith.constant 0 : index
    %96 = vector.load %arg18[%c0_68, %c0_69] : memref<3x1xf32, #tpu.memory_space<vmem>>, vector<3x1xf32>
    %97 = vector.broadcast %96 : vector<3x1xf32> to vector<3x256xf32>
    %98 = arith.addf %95, %97 : vector<3x256xf32>
    %99 = arith.negf %84 : vector<1x256xf32>
    %100 = math.exp %99 : vector<1x256xf32>
    %cst_70 = arith.constant 1.000000e+00 : f32
    %101 = vector.broadcast %cst_70 : f32 to vector<1x256xf32>
    %102 = arith.addf %101, %100 : vector<1x256xf32>
    %103 = arith.divf %101, %102 : vector<1x256xf32>
    %104 = tpu.concatenate %98, %103 in 0 : vector<3x256xf32>, vector<1x256xf32> -> vector<4x256xf32>
    %c0_71 = arith.constant 0 : index
    %c0_72 = arith.constant 0 : index
    %c0_73 = arith.constant 0 : index
    %105 = vector.load %arg19[%c0_71, %c0_72, %c0_73] : memref<1x4x256xf32, #tpu.memory_space<vmem>>, vector<1x4x256xf32>
    %106 = vector.shape_cast %105 : vector<1x4x256xf32> to vector<4x256xf32>
    %107 = vector.shape_cast %104 : vector<4x256xf32> to vector<1x4x256xf32>
    tpu.vector_store %arg19[%c0_71, %c0_72, %c0_73], %107 {strides = array<i32>} : memref<1x4x256xf32, #tpu.memory_space<vmem>>, vector<1x4x256xf32>,
    return
  }
  func.func @transform_0(%arg0: i32, %arg1: i32) -> (i32, i32, i32) {
    %c0_i32 = arith.constant 0 : i32
    %c0_i32_0 = arith.constant 0 : i32
    return %arg0, %c0_i32, %arg1 : i32, i32, i32
  }
  func.func @transform_1(%arg0: i32, %arg1: i32) -> (i32, i32, i32) {
    %c0_i32 = arith.constant 0 : i32
    %c0_i32_0 = arith.constant 0 : i32
    %c0_i32_1 = arith.constant 0 : i32
    return %arg0, %c0_i32, %c0_i32_0 : i32, i32, i32
  }
  func.func @transform_2(%arg0: i32, %arg1: i32) -> (i32, i32) {
    %c0_i32 = arith.constant 0 : i32
    %c0_i32_0 = arith.constant 0 : i32
    %c0_i32_1 = arith.constant 0 : i32
    return %c0_i32, %c0_i32_0 : i32, i32
  }
  func.func @transform_3(%arg0: i32, %arg1: i32) -> (i32, i32, i32) {
    %c0_i32 = arith.constant 0 : i32
    %c0_i32_0 = arith.constant 0 : i32
    %c0_i32_1 = arith.constant 0 : i32
    %c0_i32_2 = arith.constant 0 : i32
    return %c0_i32, %c0_i32_0, %c0_i32_1 : i32, i32, i32
  }
  func.func @transform_4(%arg0: i32, %arg1: i32) -> (i32, i32, i32) {
    %c0_i32 = arith.constant 0 : i32
    %c0_i32_0 = arith.constant 0 : i32
    %c0_i32_1 = arith.constant 0 : i32
    %c0_i32_2 = arith.constant 0 : i32
    return %c0_i32, %c0_i32_0, %c0_i32_1 : i32, i32, i32
  }
  func.func @transform_5(%arg0: i32, %arg1: i32) -> (i32, i32, i32) {
    %c0_i32 = arith.constant 0 : i32
    %c0_i32_0 = arith.constant 0 : i32
    %c0_i32_1 = arith.constant 0 : i32
    %c0_i32_2 = arith.constant 0 : i32
    return %c0_i32, %c0_i32_0, %c0_i32_1 : i32, i32, i32
  }
  func.func @transform_6(%arg0: i32, %arg1: i32) -> (i32, i32, i32) {
    %c0_i32 = arith.constant 0 : i32
    %c0_i32_0 = arith.constant 0 : i32
    %c0_i32_1 = arith.constant 0 : i32
    %c0_i32_2 = arith.constant 0 : i32
    return %c0_i32, %c0_i32_0, %c0_i32_1 : i32, i32, i32
  }
  func.func @transform_7(%arg0: i32, %arg1: i32) -> (i32, i32, i32) {
    %c0_i32 = arith.constant 0 : i32
    %c0_i32_0 = arith.constant 0 : i32
    %c0_i32_1 = arith.constant 0 : i32
    %c0_i32_2 = arith.constant 0 : i32
    return %c0_i32, %c0_i32_0, %c0_i32_1 : i32, i32, i32
  }
  func.func @transform_8(%arg0: i32, %arg1: i32) -> (i32, i32, i32) {
    %c0_i32 = arith.constant 0 : i32
    %c0_i32_0 = arith.constant 0 : i32
    %c0_i32_1 = arith.constant 0 : i32
    %c0_i32_2 = arith.constant 0 : i32
    return %c0_i32, %c0_i32_0, %c0_i32_1 : i32, i32, i32
  }
  func.func @transform_9(%arg0: i32, %arg1: i32) -> (i32, i32) {
    %c0_i32 = arith.constant 0 : i32
    %c0_i32_0 = arith.constant 0 : i32
    %c0_i32_1 = arith.constant 0 : i32
    return %c0_i32, %c0_i32_0 : i32, i32
  }
  func.func @transform_10(%arg0: i32, %arg1: i32) -> (i32, i32) {
    %c0_i32 = arith.constant 0 : i32
    %c0_i32_0 = arith.constant 0 : i32
    %c0_i32_1 = arith.constant 0 : i32
    return %c0_i32, %c0_i32_0 : i32, i32
  }
  func.func @transform_11(%arg0: i32, %arg1: i32) -> (i32, i32) {
    %c0_i32 = arith.constant 0 : i32
    %c0_i32_0 = arith.constant 0 : i32
    %c0_i32_1 = arith.constant 0 : i32
    return %c0_i32, %c0_i32_0 : i32, i32
  }
  func.func @transform_12(%arg0: i32, %arg1: i32) -> (i32, i32) {
    %c0_i32 = arith.constant 0 : i32
    %c0_i32_0 = arith.constant 0 : i32
    %c0_i32_1 = arith.constant 0 : i32
    return %c0_i32, %c0_i32_0 : i32, i32
  }
  func.func @transform_13(%arg0: i32, %arg1: i32) -> (i32, i32) {
    %c0_i32 = arith.constant 0 : i32
    %c0_i32_0 = arith.constant 0 : i32
    %c0_i32_1 = arith.constant 0 : i32
    return %c0_i32, %c0_i32_0 : i32, i32
  }
  func.func @transform_14(%arg0: i32, %arg1: i32) -> (i32, i32) {
    %c0_i32 = arith.constant 0 : i32
    %c0_i32_0 = arith.constant 0 : i32
    %c0_i32_1 = arith.constant 0 : i32
    return %c0_i32, %c0_i32_0 : i32, i32
  }
  func.func @transform_15(%arg0: i32, %arg1: i32) -> (i32, i32) {
    %c0_i32 = arith.constant 0 : i32
    %c0_i32_0 = arith.constant 0 : i32
    %c0_i32_1 = arith.constant 0 : i32
    return %c0_i32, %c0_i32_0 : i32, i32
  }
  func.func @transform_16(%arg0: i32, %arg1: i32) -> (i32, i32) {
    %c0_i32 = arith.constant 0 : i32
    %c0_i32_0 = arith.constant 0 : i32
    %c0_i32_1 = arith.constant 0 : i32
    return %c0_i32, %c0_i32_0 : i32, i32
  }
  func.func @transform_17(%arg0: i32, %arg1: i32) -> (i32, i32, i32) {
    %c0_i32 = arith.constant 0 : i32
    %c0_i32_0 = arith.constant 0 : i32
    return %arg0, %c0_i32, %arg1 : i32, i32, i32
  }
}

</mosaic_0001>

<llo_original>
// kernel: mul.9
$region0: #{mul.9}
  #allocation0 [shape = 's32[1]{0}', space=sflag, size = 0x4, scoped, tag = 'scoped memory for mul.9']
  %s0 = inlined_call_operand.vmem [shape: f32[2,32,1], index: 0, kind: input, shape index: {}]
  %s1 = inlined_call_operand.vmem [shape: f32[2,32,1], index: 1, kind: input, shape index: {}]
  %s2 = inlined_call_operand.vmem [shape: f32[2,32,1], index: 2, kind: output, shape index: {}]
  %v3 = vld [vmem:[%s0] sm:$0x3]
  %v4 = vld [vmem:[%s1] sm:$0x3]
  %5 = xla_tuple %v3, %v4
  %6 = xla_tuple %5
  %v7 = vmul.f32 %v3, %v4
  %8 = xla_tuple %v7
  %9 = vst [vmem:[%s2] sm:$0x3] %v7

// kernel: scorenet_forward.1
$region0: #{scorenet_forward.1}
  #allocation0 [shape = 'u32[]', space=smem, size = 0x4, offset = 0x4, fixed_abs, tag = 'smem constant byte address 0x4 - core index']
  #allocation1 [shape = 'u32[144,128]{1,0:T(1,128)}', space=vmem, size = 0x12000, scoped, tag = 'internal scratch']
  #allocation2 [shape = 'f32[1,1]{1,0:T(1,128)S(1)}', space=vmem, size = 0x200, scoped, tag = 'scoped memory for scorenet_forward.1']
  %s0 = inlined_call_operand.vmem [shape: bf16[2,3,512], index: 0, kind: input, shape index: {}]
  %s1 = inlined_call_operand.vmem [shape: f32[2,96,1], index: 1, kind: input, shape index: {}]
  %s2 = inlined_call_operand.vmem [shape: bf16[96,3], index: 2, kind: input, shape index: {}]
  %s3 = inlined_call_operand.vmem [shape: f32[2,32,1], index: 3, kind: input, shape index: {}]
  %s4 = inlined_call_operand.vmem [shape: f32[2,32,1], index: 4, kind: input, shape index: {}]
  %s5 = inlined_call_operand.vmem [shape: bf16[2,32,32], index: 5, kind: input, shape index: {}]
  %s6 = inlined_call_operand.vmem [shape: f32[2,32,1], index: 6, kind: input, shape index: {}]
  %s7 = inlined_call_operand.vmem [shape: bf16[2,32,32], index: 7, kind: input, shape index: {}]
  %s8 = inlined_call_operand.vmem [shape: f32[2,32,1], index: 8, kind: input, shape index: {}]
  %s9 = inlined_call_operand.vmem [shape: f32[32,1], index: 9, kind: input, shape index: {}]
  %s10 = inlined_call_operand.vmem [shape: f32[32,1], index: 10, kind: input, shape index: {}]
  %s11 = inlined_call_operand.vmem [shape: bf16[1,32], index: 11, kind: input, shape index: {}]
  %s12 = inlined_call_operand.<no memory space> [shape: f32[1,1], index: 12, kind: input, shape index: {}]
  %s13 = inlined_call_operand.vmem [shape: f32[32,1], index: 13, kind: input, shape index: {}]
  %s14 = inlined_call_operand.vmem [shape: f32[32,1], index: 14, kind: input, shape index: {}]
  %s15 = inlined_call_operand.vmem [shape: bf16[3,32], index: 15, kind: input, shape index: {}]
  %s16 = inlined_call_operand.vmem [shape: f32[3,1], index: 16, kind: input, shape index: {}]
  %s17 = inlined_call_operand.vmem [shape: f32[2,4,512], index: 17, kind: output, shape index: {}]
  %s18 = sld [smem:[#allocation0]]
  $region101: #{scorenet_forward.1} parent=0
    _
  %s20 = ssub.s32 1, %s18
  %s21 = scalar_select 0, %s20, %s18
  %v22 = vstv %s12
  %23 = vst [vmem:[#allocation2] sm:$0x1] %v22
  loop: start=0, step=1, limit=6
  $region2: #{scorenet_forward.1} parent=0 // loop_pre_header
    _
  $region3: #{scorenet_forward.1} parent=0 // loop_header
    %s25 = sphi 0, %s29
    %p26 = scmp.ge.s32.totalorder %s25, 6
    %s32 = sphi 0, %s44
    %s33 = sphi 0, %s40
    %s34 = sphi 0, %s32
    %s35 = sphi 0, %s33
    %s36 = sphi 0, %s34
    %s37 = sphi 0, %s35
    %s49 = sphi 0, %s51
    %s52 = sphi 0, %s49
    %s53 = sphi 0, %s52
    %s69 = sphi 0, %s53
    %s75 = sphi 0, %s77
    %s78 = sphi 0, %s75
    %s79 = sphi 0, %s78
    %s95 = sphi 0, %s79
    %s99 = sphi 0, %s99
    %s101 = sphi 0, %s99
    %s102 = sphi 0, %s101
    %s116 = sphi 0, %s102
    %s120 = sphi 0, %s120
    %s122 = sphi 0, %s120
    %s123 = sphi 0, %s122
    %s137 = sphi 0, %s123
    %s141 = sphi 0, %s141
    %s143 = sphi 0, %s141
    %s144 = sphi 0, %s143
    %s158 = sphi 0, %s144
    %s162 = sphi 0, %s162
    %s164 = sphi 0, %s162
    %s165 = sphi 0, %s164
    %s179 = sphi 0, %s165
    %s183 = sphi 0, %s183
    %s185 = sphi 0, %s183
    %s186 = sphi 0, %s185
    %s200 = sphi 0, %s186
    %s204 = sphi 0, %s204
    %s206 = sphi 0, %s204
    %s207 = sphi 0, %s206
    %s221 = sphi 0, %s207
    %s225 = sphi 0, %s225
    %s227 = sphi 0, %s225
    %s228 = sphi 0, %s227
    %s242 = sphi 0, %s228
    %s246 = sphi 0, %s246
    %s248 = sphi 0, %s246
    %s249 = sphi 0, %s248
    %s263 = sphi 0, %s249
    %s267 = sphi 0, %s267
    %s269 = sphi 0, %s267
    %s270 = sphi 0, %s269
    %s284 = sphi 0, %s270
    %s288 = sphi 0, %s288
    %s290 = sphi 0, %s288
    %s291 = sphi 0, %s290
    %s305 = sphi 0, %s291
    %s309 = sphi 0, %s309
    %s311 = sphi 0, %s309
    %s312 = sphi 0, %s311
    %s326 = sphi 0, %s312
    %s330 = sphi 0, %s330
    %s332 = sphi 0, %s330
    %s333 = sphi 0, %s332
    %s347 = sphi 0, %s333
    %s351 = sphi 0, %s351
    %s353 = sphi 0, %s351
    %s354 = sphi 0, %s353
    %s368 = sphi 0, %s354
    %s372 = sphi 0, %s372
    %s374 = sphi 0, %s372
    %s375 = sphi 0, %s374
    %s389 = sphi 0, %s375
    %s393 = sphi 0, %s393
    %s395 = sphi 0, %s393
    %s396 = sphi 0, %s395
    %s410 = sphi 0, %s396
    %s418 = sphi 0, %s420
    %s421 = sphi 0, %s418
    %s422 = sphi 0, %s421
    %s438 = sphi 0, %s422
  $region4: #{scorenet_forward.1} parent=0 // loop_header_branch
    %28 = sbr.rel (%p26) target = $region8
  $region5: #{scorenet_forward.1} parent=0 // loop_body
    %s30 = ssub.s32 %s25, 1
    %s31 = ssub.s32 %s25, 2
    %s38 = sadd.s32 1, %s33
    %p39 = scmp.ge.s32.totalorder %s38, 2
    %s40 = scalar_select %p39, 0, %s38
    %s41 = sadd.s32 1, %s32
    %s42 = scalar_select %p39, %s41, %s32
    %p43 = scmp.ge.s32.totalorder %s42, 2
    %s44 = scalar_select %p43, 0, %s42
    %s45 = ssub.s32 %s32, %s44
    %s46 = ssub.s32 %s33, %s40
    %s47 = sor.u32 %s45, %s46
    %p48 = scmp.eq.s32.totalorder %s47, 0
    %s50 = sadd.s32 %s49, 1
    %s51 = scalar_select %p48, %s49, %s50
    %p54 = pneg %p48
    %p55 = scmp.eq.s32.totalorder %s25, 3
    %p56 = por %p54, %p55
    %p57 = scmp.ne.s32.totalorder %s49, %s52
    %p58 = scmp.eq.s32.totalorder %s25, 0
    %p59 = por %p57, %p58
    %p60 = scmp.ne.s32.totalorder %s49, %s52
    %p61 = scmp.eq.s32.totalorder %s30, 3
    %p62 = por %p60, %p61
    %p63 = scmp.ne.s32.totalorder %s52, %s53
    %p64 = scmp.eq.s32.totalorder %s30, 0
    %p65 = por %p63, %p64
    %p66 = scmp.ne.s32.totalorder %s52, %s53
    %p67 = scmp.eq.s32.totalorder %s31, 3
    %p68 = por %p66, %p67
    %p70 = scmp.ne.s32.totalorder %s53, %s69
    %p71 = scmp.eq.s32.totalorder %s31, 0
    %p72 = por %p70, %p71
    %s73 = ssub.s32 %s32, %s44
    %p74 = scmp.eq.s32.totalorder %s73, 0
    %s76 = sadd.s32 %s75, 1
    %s77 = scalar_select %p74, %s75, %s76
    %p80 = pneg %p74
    %p81 = scmp.eq.s32.totalorder %s25, 3
    %p82 = por %p80, %p81
    %p83 = scmp.ne.s32.totalorder %s75, %s78
    %p84 = scmp.eq.s32.totalorder %s25, 0
    %p85 = por %p83, %p84
    %p86 = scmp.ne.s32.totalorder %s75, %s78
    %p87 = scmp.eq.s32.totalorder %s30, 3
    %p88 = por %p86, %p87
    %p89 = scmp.ne.s32.totalorder %s78, %s79
    %p90 = scmp.eq.s32.totalorder %s30, 0
    %p91 = por %p89, %p90
    %p92 = scmp.ne.s32.totalorder %s78, %s79
    %p93 = scmp.eq.s32.totalorder %s31, 3
    %p94 = por %p92, %p93
    %p96 = scmp.ne.s32.totalorder %s79, %s95
    %p97 = scmp.eq.s32.totalorder %s31, 0
    %p98 = por %p96, %p97
    %s100 = sadd.s32 %s99, 1
    %p103 = scmp.eq.s32.totalorder %s25, 3
    %p104 = scmp.ne.s32.totalorder %s99, %s101
    %p105 = scmp.eq.s32.totalorder %s25, 0
    %p106 = por %p104, %p105
    %p107 = scmp.ne.s32.totalorder %s99, %s101
    %p108 = scmp.eq.s32.totalorder %s30, 3
    %p109 = por %p107, %p108
    %p110 = scmp.ne.s32.totalorder %s101, %s102
    %p111 = scmp.eq.s32.totalorder %s30, 0
    %p112 = por %p110, %p111
    %p113 = scmp.ne.s32.totalorder %s101, %s102
    %p114 = scmp.eq.s32.totalorder %s31, 3
    %p115 = por %p113, %p114
    %p117 = scmp.ne.s32.totalorder %s102, %s116
    %p118 = scmp.eq.s32.totalorder %s31, 0
    %p119 = por %p117, %p118
    %s121 = sadd.s32 %s120, 1
    %p124 = scmp.eq.s32.totalorder %s25, 3
    %p125 = scmp.ne.s32.totalorder %s120, %s122
    %p126 = scmp.eq.s32.totalorder %s25, 0
    %p127 = por %p125, %p126
    %p128 = scmp.ne.s32.totalorder %s120, %s122
    %p129 = scmp.eq.s32.totalorder %s30, 3
    %p130 = por %p128, %p129
    %p131 = scmp.ne.s32.totalorder %s122, %s123
    %p132 = scmp.eq.s32.totalorder %s30, 0
    %p133 = por %p131, %p132
    %p134 = scmp.ne.s32.totalorder %s122, %s123
    %p135 = scmp.eq.s32.totalorder %s31, 3
    %p136 = por %p134, %p135
    %p138 = scmp.ne.s32.totalorder %s123, %s137
    %p139 = scmp.eq.s32.totalorder %s31, 0
    %p140 = por %p138, %p139
    %s142 = sadd.s32 %s141, 1
    %p145 = scmp.eq.s32.totalorder %s25, 3
    %p146 = scmp.ne.s32.totalorder %s141, %s143
    %p147 = scmp.eq.s32.totalorder %s25, 0
    %p148 = por %p146, %p147
    %p149 = scmp.ne.s32.totalorder %s141, %s143
    %p150 = scmp.eq.s32.totalorder %s30, 3
    %p151 = por %p149, %p150
    %p152 = scmp.ne.s32.totalorder %s143, %s144
    %p153 = scmp.eq.s32.totalorder %s30, 0
    %p154 = por %p152, %p153
    %p155 = scmp.ne.s32.totalorder %s143, %s144
    %p156 = scmp.eq.s32.totalorder %s31, 3
    %p157 = por %p155, %p156
    %p159 = scmp.ne.s32.totalorder %s144, %s158
    %p160 = scmp.eq.s32.totalorder %s31, 0
    %p161 = por %p159, %p160
    %s163 = sadd.s32 %s162, 1
    %p166 = scmp.eq.s32.totalorder %s25, 3
    %p167 = scmp.ne.s32.totalorder %s162, %s164
    %p168 = scmp.eq.s32.totalorder %s25, 0
    %p169 = por %p167, %p168
    %p170 = scmp.ne.s32.totalorder %s162, %s164
    %p171 = scmp.eq.s32.totalorder %s30, 3
    %p172 = por %p170, %p171
    %p173 = scmp.ne.s32.totalorder %s164, %s165
    %p174 = scmp.eq.s32.totalorder %s30, 0
    %p175 = por %p173, %p174
    %p176 = scmp.ne.s32.totalorder %s164, %s165
    %p177 = scmp.eq.s32.totalorder %s31, 3
    %p178 = por %p176, %p177
    %p180 = scmp.ne.s32.totalorder %s165, %s179
    %p181 = scmp.eq.s32.totalorder %s31, 0
    %p182 = por %p180, %p181
    %s184 = sadd.s32 %s183, 1
    %p187 = scmp.eq.s32.totalorder %s25, 3
    %p188 = scmp.ne.s32.totalorder %s183, %s185
    %p189 = scmp.eq.s32.totalorder %s25, 0
    %p190 = por %p188, %p189
    %p191 = scmp.ne.s32.totalorder %s183, %s185
    %p192 = scmp.eq.s32.totalorder %s30, 3
    %p193 = por %p191, %p192
    %p194 = scmp.ne.s32.totalorder %s185, %s186
    %p195 = scmp.eq.s32.totalorder %s30, 0
    %p196 = por %p194, %p195
    %p197 = scmp.ne.s32.totalorder %s185, %s186
    %p198 = scmp.eq.s32.totalorder %s31, 3
    %p199 = por %p197, %p198
    %p201 = scmp.ne.s32.totalorder %s186, %s200
    %p202 = scmp.eq.s32.totalorder %s31, 0
    %p203 = por %p201, %p202
    %s205 = sadd.s32 %s204, 1
    %p208 = scmp.eq.s32.totalorder %s25, 3
    %p209 = scmp.ne.s32.totalorder %s204, %s206
    %p210 = scmp.eq.s32.totalorder %s25, 0
    %p211 = por %p209, %p210
    %p212 = scmp.ne.s32.totalorder %s204, %s206
    %p213 = scmp.eq.s32.totalorder %s30, 3
    %p214 = por %p212, %p213
    %p215 = scmp.ne.s32.totalorder %s206, %s207
    %p216 = scmp.eq.s32.totalorder %s30, 0
    %p217 = por %p215, %p216
    %p218 = scmp.ne.s32.totalorder %s206, %s207
    %p219 = scmp.eq.s32.totalorder %s31, 3
    %p220 = por %p218, %p219
    %p222 = scmp.ne.s32.totalorder %s207, %s221
    %p223 = scmp.eq.s32.totalorder %s31, 0
    %p224 = por %p222, %p223
    %s226 = sadd.s32 %s225, 1
    %p229 = scmp.eq.s32.totalorder %s25, 3
    %p230 = scmp.ne.s32.totalorder %s225, %s227
    %p231 = scmp.eq.s32.totalorder %s25, 0
    %p232 = por %p230, %p231
    %p233 = scmp.ne.s32.totalorder %s225, %s227
    %p234 = scmp.eq.s32.totalorder %s30, 3
    %p235 = por %p233, %p234
    %p236 = scmp.ne.s32.totalorder %s227, %s228
    %p237 = scmp.eq.s32.totalorder %s30, 0
    %p238 = por %p236, %p237
    %p239 = scmp.ne.s32.totalorder %s227, %s228
    %p240 = scmp.eq.s32.totalorder %s31, 3
    %p241 = por %p239, %p240
    %p243 = scmp.ne.s32.totalorder %s228, %s242
    %p244 = scmp.eq.s32.totalorder %s31, 0
    %p245 = por %p243, %p244
    %s247 = sadd.s32 %s246, 1
    %p250 = scmp.eq.s32.totalorder %s25, 3
    %p251 = scmp.ne.s32.totalorder %s246, %s248
    %p252 = scmp.eq.s32.totalorder %s25, 0
    %p253 = por %p251, %p252
    %p254 = scmp.ne.s32.totalorder %s246, %s248
    %p255 = scmp.eq.s32.totalorder %s30, 3
    %p256 = por %p254, %p255
    %p257 = scmp.ne.s32.totalorder %s248, %s249
    %p258 = scmp.eq.s32.totalorder %s30, 0
    %p259 = por %p257, %p258
    %p260 = scmp.ne.s32.totalorder %s248, %s249
    %p261 = scmp.eq.s32.totalorder %s31, 3
    %p262 = por %p260, %p261
    %p264 = scmp.ne.s32.totalorder %s249, %s263
    %p265 = scmp.eq.s32.totalorder %s31, 0
    %p266 = por %p264, %p265
    %s268 = sadd.s32 %s267, 1
    %p271 = scmp.eq.s32.totalorder %s25, 3
    %p272 = scmp.ne.s32.totalorder %s267, %s269
    %p273 = scmp.eq.s32.totalorder %s25, 0
    %p274 = por %p272, %p273
    %p275 = scmp.ne.s32.totalorder %s267, %s269
    %p276 = scmp.eq.s32.totalorder %s30, 3
    %p277 = por %p275, %p276
    %p278 = scmp.ne.s32.totalorder %s269, %s270
    %p279 = scmp.eq.s32.totalorder %s30, 0
    %p280 = por %p278, %p279
    %p281 = scmp.ne.s32.totalorder %s269, %s270
    %p282 = scmp.eq.s32.totalorder %s31, 3
    %p283 = por %p281, %p282
    %p285 = scmp.ne.s32.totalorder %s270, %s284
    %p286 = scmp.eq.s32.totalorder %s31, 0
    %p287 = por %p285, %p286
    %s289 = sadd.s32 %s288, 1
    %p292 = scmp.eq.s32.totalorder %s25, 3
    %p293 = scmp.ne.s32.totalorder %s288, %s290
    %p294 = scmp.eq.s32.totalorder %s25, 0
    %p295 = por %p293, %p294
    %p296 = scmp.ne.s32.totalorder %s288, %s290
    %p297 = scmp.eq.s32.totalorder %s30, 3
    %p298 = por %p296, %p297
    %p299 = scmp.ne.s32.totalorder %s290, %s291
    %p300 = scmp.eq.s32.totalorder %s30, 0
    %p301 = por %p299, %p300
    %p302 = scmp.ne.s32.totalorder %s290, %s291
    %p303 = scmp.eq.s32.totalorder %s31, 3
    %p304 = por %p302, %p303
    %p306 = scmp.ne.s32.totalorder %s291, %s305
    %p307 = scmp.eq.s32.totalorder %s31, 0
    %p308 = por %p306, %p307
    %s310 = sadd.s32 %s309, 1
    %p313 = scmp.eq.s32.totalorder %s25, 3
    %p314 = scmp.ne.s32.totalorder %s309, %s311
    %p315 = scmp.eq.s32.totalorder %s25, 0
    %p316 = por %p314, %p315
    %p317 = scmp.ne.s32.totalorder %s309, %s311
    %p318 = scmp.eq.s32.totalorder %s30, 3
    %p319 = por %p317, %p318
    %p320 = scmp.ne.s32.totalorder %s311, %s312
    %p321 = scmp.eq.s32.totalorder %s30, 0
    %p322 = por %p320, %p321
    %p323 = scmp.ne.s32.totalorder %s311, %s312
    %p324 = scmp.eq.s32.totalorder %s31, 3
    %p325 = por %p323, %p324
    %p327 = scmp.ne.s32.totalorder %s312, %s326
    %p328 = scmp.eq.s32.totalorder %s31, 0
    %p329 = por %p327, %p328
    %s331 = sadd.s32 %s330, 1
    %p334 = scmp.eq.s32.totalorder %s25, 3
    %p335 = scmp.ne.s32.totalorder %s330, %s332
    %p336 = scmp.eq.s32.totalorder %s25, 0
    %p337 = por %p335, %p336
    %p338 = scmp.ne.s32.totalorder %s330, %s332
    %p339 = scmp.eq.s32.totalorder %s30, 3
    %p340 = por %p338, %p339
    %p341 = scmp.ne.s32.totalorder %s332, %s333
    %p342 = scmp.eq.s32.totalorder %s30, 0
    %p343 = por %p341, %p342
    %p344 = scmp.ne.s32.totalorder %s332, %s333
    %p345 = scmp.eq.s32.totalorder %s31, 3
    %p346 = por %p344, %p345
    %p348 = scmp.ne.s32.totalorder %s333, %s347
    %p349 = scmp.eq.s32.totalorder %s31, 0
    %p350 = por %p348, %p349
    %s352 = sadd.s32 %s351, 1
    %p355 = scmp.eq.s32.totalorder %s25, 3
    %p356 = scmp.ne.s32.totalorder %s351, %s353
    %p357 = scmp.eq.s32.totalorder %s25, 0
    %p358 = por %p356, %p357
    %p359 = scmp.ne.s32.totalorder %s351, %s353
    %p360 = scmp.eq.s32.totalorder %s30, 3
    %p361 = por %p359, %p360
    %p362 = scmp.ne.s32.totalorder %s353, %s354
    %p363 = scmp.eq.s32.totalorder %s30, 0
    %p364 = por %p362, %p363
    %p365 = scmp.ne.s32.totalorder %s353, %s354
    %p366 = scmp.eq.s32.totalorder %s31, 3
    %p367 = por %p365, %p366
    %p369 = scmp.ne.s32.totalorder %s354, %s368
    %p370 = scmp.eq.s32.totalorder %s31, 0
    %p371 = por %p369, %p370
    %s373 = sadd.s32 %s372, 1
    %p376 = scmp.eq.s32.totalorder %s25, 3
    %p377 = scmp.ne.s32.totalorder %s372, %s374
    %p378 = scmp.eq.s32.totalorder %s25, 0
    %p379 = por %p377, %p378
    %p380 = scmp.ne.s32.totalorder %s372, %s374
    %p381 = scmp.eq.s32.totalorder %s30, 3
    %p382 = por %p380, %p381
    %p383 = scmp.ne.s32.totalorder %s374, %s375
    %p384 = scmp.eq.s32.totalorder %s30, 0
    %p385 = por %p383, %p384
    %p386 = scmp.ne.s32.totalorder %s374, %s375
    %p387 = scmp.eq.s32.totalorder %s31, 3
    %p388 = por %p386, %p387
    %p390 = scmp.ne.s32.totalorder %s375, %s389
    %p391 = scmp.eq.s32.totalorder %s31, 0
    %p392 = por %p390, %p391
    %s394 = sadd.s32 %s393, 1
    %p397 = scmp.eq.s32.totalorder %s25, 3
    %p398 = scmp.ne.s32.totalorder %s393, %s395
    %p399 = scmp.eq.s32.totalorder %s25, 0
    %p400 = por %p398, %p399
    %p401 = scmp.ne.s32.totalorder %s393, %s395
    %p402 = scmp.eq.s32.totalorder %s30, 3
    %p403 = por %p401, %p402
    %p404 = scmp.ne.s32.totalorder %s395, %s396
    %p405 = scmp.eq.s32.totalorder %s30, 0
    %p406 = por %p404, %p405
    %p407 = scmp.ne.s32.totalorder %s395, %s396
    %p408 = scmp.eq.s32.totalorder %s31, 3
    %p409 = por %p407, %p408
    %p411 = scmp.ne.s32.totalorder %s396, %s410
    %p412 = scmp.eq.s32.totalorder %s31, 0
    %p413 = por %p411, %p412
    %s414 = ssub.s32 %s32, %s44
    %s415 = ssub.s32 %s33, %s40
    %s416 = sor.u32 %s414, %s415
    %p417 = scmp.eq.s32.totalorder %s416, 0
    %s419 = sadd.s32 %s418, 1
    %s420 = scalar_select %p417, %s418, %s419
    %p423 = pneg %p417
    %p424 = scmp.eq.s32.totalorder %s25, 3
    %p425 = por %p423, %p424
    %p426 = scmp.ne.s32.totalorder %s418, %s421
    %p427 = scmp.eq.s32.totalorder %s25, 0
    %p428 = por %p426, %p427
    %p429 = scmp.ne.s32.totalorder %s418, %s421
    %p430 = scmp.eq.s32.totalorder %s30, 3
    %p431 = por %p429, %p430
    %p432 = scmp.ne.s32.totalorder %s421, %s422
    %p433 = scmp.eq.s32.totalorder %s30, 0
    %p434 = por %p432, %p433
    %p435 = scmp.ne.s32.totalorder %s421, %s422
    %p436 = scmp.eq.s32.totalorder %s31, 3
    %p437 = por %p435, %p436
    %p439 = scmp.ne.s32.totalorder %s422, %s438
    %p440 = scmp.eq.s32.totalorder %s31, 0
    %p441 = por %p439, %p440
    %p442 = scmp.le.s32.totalorder 1, %s25
    %p443 = scmp.lt.s32.totalorder %s25, 5
    %p444 = pnand %p442, %p443
    %p445 = pneg %p444
    // Predicated region
    $region9: #{scorenet_forward.1} parent=5 // pred_check
      _
    $region10: #{scorenet_forward.1} parent=5 // pred_check_branch
      %447 = sbr.rel (%p444) target = $region12
    $region11: #{scorenet_forward.1} parent=5 // pred_region
      %s448 = ssub.s32 %s25, 1
      // Predicated region
      $region13: #{scorenet_forward.1} parent=11 // pred_check
        %p449 = pneg %p112
      $region14: #{scorenet_forward.1} parent=11 // pred_check_branch
        %451 = sbr.rel (%p449) target = $region16
      $region15: #{scorenet_forward.1} parent=11 // pred_region
        _
      $region16: #{scorenet_forward.1} parent=11 // pred_fallthru
        _
      // Predicated region
      $region17: #{scorenet_forward.1} parent=11 // pred_check
        %p452 = pneg %p133
      $region18: #{scorenet_forward.1} parent=11 // pred_check_branch
        %454 = sbr.rel (%p452) target = $region20
      $region19: #{scorenet_forward.1} parent=11 // pred_region
        _
      $region20: #{scorenet_forward.1} parent=11 // pred_fallthru
        _
      // Predicated region
      $region21: #{scorenet_forward.1} parent=11 // pred_check
        %p455 = pneg %p154
      $region22: #{scorenet_forward.1} parent=11 // pred_check_branch
        %457 = sbr.rel (%p455) target = $region24
      $region23: #{scorenet_forward.1} parent=11 // pred_region
        _
      $region24: #{scorenet_forward.1} parent=11 // pred_fallthru
        _
      // Predicated region
      $region25: #{scorenet_forward.1} parent=11 // pred_check
        %p458 = pneg %p175
      $region26: #{scorenet_forward.1} parent=11 // pred_check_branch
        %460 = sbr.rel (%p458) target = $region28
      $region27: #{scorenet_forward.1} parent=11 // pred_region
        _
      $region28: #{scorenet_forward.1} parent=11 // pred_fallthru
        _
      // Predicated region
      $region29: #{scorenet_forward.1} parent=11 // pred_check
        %p461 = pneg %p196
      $region30: #{scorenet_forward.1} parent=11 // pred_check_branch
        %463 = sbr.rel (%p461) target = $region32
      $region31: #{scorenet_forward.1} parent=11 // pred_region
        _
      $region32: #{scorenet_forward.1} parent=11 // pred_fallthru
        _
      // Predicated region
      $region33: #{scorenet_forward.1} parent=11 // pred_check
        %p464 = pneg %p217
      $region34: #{scorenet_forward.1} parent=11 // pred_check_branch
        %466 = sbr.rel (%p464) target = $region36
      $region35: #{scorenet_forward.1} parent=11 // pred_region
        _
      $region36: #{scorenet_forward.1} parent=11 // pred_fallthru
        _
      // Predicated region
      $region37: #{scorenet_forward.1} parent=11 // pred_check
        %p467 = pneg %p238
      $region38: #{scorenet_forward.1} parent=11 // pred_check_branch
        %469 = sbr.rel (%p467) target = $region40
      $region39: #{scorenet_forward.1} parent=11 // pred_region
        _
      $region40: #{scorenet_forward.1} parent=11 // pred_fallthru
        _
      // Predicated region
      $region41: #{scorenet_forward.1} parent=11 // pred_check
        %p470 = pneg %p259
      $region42: #{scorenet_forward.1} parent=11 // pred_check_branch
        %472 = sbr.rel (%p470) target = $region44
      $region43: #{scorenet_forward.1} parent=11 // pred_region
        _
      $region44: #{scorenet_forward.1} parent=11 // pred_fallthru
        _
      // Predicated region
      $region45: #{scorenet_forward.1} parent=11 // pred_check
        %p473 = pneg %p280
      $region46: #{scorenet_forward.1} parent=11 // pred_check_branch
        %475 = sbr.rel (%p473) target = $region48
      $region47: #{scorenet_forward.1} parent=11 // pred_region
        _
      $region48: #{scorenet_forward.1} parent=11 // pred_fallthru
        _
      // Predicated region
      $region49: #{scorenet_forward.1} parent=11 // pred_check
        %p476 = pneg %p301
      $region50: #{scorenet_forward.1} parent=11 // pred_check_branch
        %478 = sbr.rel (%p476) target = $region52
      $region51: #{scorenet_forward.1} parent=11 // pred_region
        _
      $region52: #{scorenet_forward.1} parent=11 // pred_fallthru
        _
      // Predicated region
      $region53: #{scorenet_forward.1} parent=11 // pred_check
        %p479 = pneg %p322
      $region54: #{scorenet_forward.1} parent=11 // pred_check_branch
        %481 = sbr.rel (%p479) target = $region56
      $region55: #{scorenet_forward.1} parent=11 // pred_region
        _
      $region56: #{scorenet_forward.1} parent=11 // pred_fallthru
        _
      // Predicated region
      $region57: #{scorenet_forward.1} parent=11 // pred_check
        %p482 = pneg %p343
      $region58: #{scorenet_forward.1} parent=11 // pred_check_branch
        %484 = sbr.rel (%p482) target = $region60
      $region59: #{scorenet_forward.1} parent=11 // pred_region
        _
      $region60: #{scorenet_forward.1} parent=11 // pred_fallthru
        _
      // Predicated region
      $region61: #{scorenet_forward.1} parent=11 // pred_check
        %p485 = pneg %p364
      $region62: #{scorenet_forward.1} parent=11 // pred_check_branch
        %487 = sbr.rel (%p485) target = $region64
      $region63: #{scorenet_forward.1} parent=11 // pred_region
        _
      $region64: #{scorenet_forward.1} parent=11 // pred_fallthru
        _
      // Predicated region
      $region65: #{scorenet_forward.1} parent=11 // pred_check
        %p488 = pneg %p385
      $region66: #{scorenet_forward.1} parent=11 // pred_check_branch
        %490 = sbr.rel (%p488) target = $region68
      $region67: #{scorenet_forward.1} parent=11 // pred_region
        _
      $region68: #{scorenet_forward.1} parent=11 // pred_fallthru
        _
      // Predicated region
      $region69: #{scorenet_forward.1} parent=11 // pred_check
        %p491 = pneg %p406
      $region70: #{scorenet_forward.1} parent=11 // pred_check_branch
        %493 = sbr.rel (%p491) target = $region72
      $region71: #{scorenet_forward.1} parent=11 // pred_region
        _
      $region72: #{scorenet_forward.1} parent=11 // pred_fallthru
        _
    $region12: #{scorenet_forward.1} parent=5 // pred_fallthru
      _
    %p494 = scmp.lt.s32.totalorder %s25, 4
    // Predicated region
    $region73: #{scorenet_forward.1} parent=5 // pred_check
      %p495 = pneg %p494
    $region74: #{scorenet_forward.1} parent=5 // pred_check_branch
      %497 = sbr.rel (%p495) target = $region76
    $region75: #{scorenet_forward.1} parent=5 // pred_region
      // Predicated region
      $region77: #{scorenet_forward.1} parent=75 // pred_check
        %p498 = pneg %p59
      $region78: #{scorenet_forward.1} parent=75 // pred_check_branch
        %500 = sbr.rel (%p498) target = $region80
      $region79: #{scorenet_forward.1} parent=75 // pred_region
        %s501 = smul.u32 2, %s33
        %p502 = scmp.lt.s32.totalorder %s32, 1
        %s503 = scalar_select %p502, %s32, 1
        %p504 = scmp.lt.s32.totalorder %s501, 3
        %s505 = scalar_select %p504, %s501, 3
        %s506 = smul.addr %s503, 4
        %s507 = sadd.s32 %s505, %s506
        %s508 = smul.addr %s507, 2
        %s509 = scalar_lea.vmem %s0, %s508
        %s510 = smul.u32 2, %s33
      $region80: #{scorenet_forward.1} parent=75 // pred_fallthru
        _
      // Predicated region
      $region81: #{scorenet_forward.1} parent=75 // pred_check
        %p511 = pneg %p85
      $region82: #{scorenet_forward.1} parent=75 // pred_check_branch
        %513 = sbr.rel (%p511) target = $region84
      $region83: #{scorenet_forward.1} parent=75 // pred_region
        %p514 = scmp.lt.s32.totalorder %s32, 1
        %s515 = scalar_select %p514, %s32, 1
        %s516 = smul.addr %s515, 12
        %s517 = smul.addr %s516, 8
        %s518 = scalar_lea.vmem %s1, %s517
      $region84: #{scorenet_forward.1} parent=75 // pred_fallthru
        _
    $region76: #{scorenet_forward.1} parent=5 // pred_fallthru
      _
    %p519 = scmp.le.s32.totalorder 1, %s25
    %p520 = scmp.lt.s32.totalorder %s25, 5
    %p521 = pnand %p519, %p520
    %p522 = pneg %p521
    // Predicated region
    $region85: #{scorenet_forward.1} parent=5 // pred_check
      _
    $region86: #{scorenet_forward.1} parent=5 // pred_check_branch
      %524 = sbr.rel (%p521) target = $region88
    $region87: #{scorenet_forward.1} parent=5 // pred_region
      %s525 = ssub.s32 %s25, 1
      %s526 = smul.u32 2, %s35
      %p527 = scmp.lt.s32.totalorder %s34, 1
      %s528 = scalar_select %p527, %s34, 1
      %p529 = scmp.lt.s32.totalorder %s526, 3
      %s530 = scalar_select %p529, %s526, 3
      %s531 = smul.addr %s528, 4
      %s532 = sadd.s32 %s530, %s531
      %s533 = smul.addr %s532, 2
      %s534 = scalar_lea.vmem %s0, %s533
      %p535 = pneg %p65
      %p536 = pneg %p62
      %p537 = scmp.lt.s32.totalorder %s34, 1
      %s538 = scalar_select %p537, %s34, 1
      %s539 = smul.addr %s538, 12
      %s540 = smul.addr %s539, 8
      %s541 = scalar_lea.vmem %s1, %s540
      %p542 = pneg %p91
      %p543 = pneg %p88
      %p544 = pneg %p112
      %p545 = pneg %p109
      %p546 = pneg %p133
      %p547 = pneg %p130
      %p548 = pneg %p154
      %p549 = pneg %p151
      %p550 = pneg %p175
      %p551 = pneg %p172
      %p552 = pneg %p196
      %p553 = pneg %p193
      %p554 = pneg %p217
      %p555 = pneg %p214
      %p556 = pneg %p238
      %p557 = pneg %p235
      %p558 = pneg %p259
      %p559 = pneg %p256
      %p560 = pneg %p280
      %p561 = pneg %p277
      %p562 = pneg %p301
      %p563 = pneg %p298
      %p564 = pneg %p322
      %p565 = pneg %p319
      %p566 = pneg %p343
      %p567 = pneg %p340
      %p568 = pneg %p364
      %p569 = pneg %p361
      %p570 = pneg %p385
      %p571 = pneg %p382
      %p572 = pneg %p406
      %p573 = pneg %p403
      %p574 = pneg %p434
      %p575 = pneg %p431
      %s576 = smul.u32 2, %s35
      %p577 = scmp.lt.s32.totalorder %s34, 1
      %s578 = scalar_select %p577, %s34, 1
      %p579 = scmp.lt.s32.totalorder %s576, 3
      %s580 = scalar_select %p579, %s576, 3
      %s581 = smul.addr %s578, 4
      %s582 = sadd.s32 %s580, %s581
      %s583 = smul.addr %s582, 4
      %s584 = scalar_lea.vmem %s17, %s583
      %s585 = smul.u32 2, %s35
      %p586 = scmp.lt.s32.totalorder %s34, 1
      %s587 = scalar_select %p586, %s34, 1
      %p588 = scmp.lt.s32.totalorder %s585, 3
      %s589 = scalar_select %p588, %s585, 3
      %s590 = smul.addr %s587, 4
      %s591 = sadd.s32 %s589, %s590
      %s592 = smul.addr %s591, 2
      %s593 = scalar_lea.vmem %s0, %s592
      %s594 = smul.u32 2, %s35
      %p595 = scmp.lt.s32.totalorder %s34, 1
      %s596 = scalar_select %p595, %s34, 1
      %s597 = smul.addr %s596, 12
      %s598 = smul.addr %s597, 8
      %s599 = scalar_lea.vmem %s1, %s598
      %s600 = smul.u32 2, %s35
      %p601 = scmp.lt.s32.totalorder %s34, 1
      %s602 = scalar_select %p601, %s34, 1
      %p603 = scmp.lt.s32.totalorder %s600, 3
      %s604 = scalar_select %p603, %s600, 3
      %s605 = smul.addr %s602, 4
      %s606 = sadd.s32 %s604, %s605
      %s607 = smul.addr %s606, 4
      %s608 = scalar_lea.vmem %s17, %s607
      %s609 = smul.u32 2, %s35
      %v611 = vld [vmem:[%s593] sm:$0xf]
      %v612 = vld [vmem:[%s2] sm:$0xf]
      %v613 = vld [vmem:[%s2 + $0x4] sm:$0xf]
      %v614 = vld [vmem:[%s2 + $0x8] sm:$0xf]
      %v615 = vld [vmem:[%s2 + $0xc] sm:$0xf]
      %v616 = vld [vmem:[%s2 + $0x10] sm:$0xf]
      %v617 = vld [vmem:[%s2 + $0x14] sm:$0xf]
      %v618 = vld [vmem:[%s2 + $0x18] sm:$0xf]
      %v619 = vld [vmem:[%s2 + $0x1c] sm:$0xf]
      %v620 = vld [vmem:[%s2 + $0x20] sm:$0xf]
      %v621 = vld [vmem:[%s2 + $0x24] sm:$0xf]
      %v622 = vld [vmem:[%s2 + $0x28] sm:$0xf]
      %v623 = vld [vmem:[%s2 + $0x2c] sm:$0xf]
      %v624 = vld [vmem:[%s599] sm:$0xff]
      %v625 = vld [vmem:[%s599 + $0x8] sm:$0xff]
      %v626 = vld [vmem:[%s599 + $0x10] sm:$0xff]
      %v627 = vld [vmem:[%s599 + $0x18] sm:$0xff]
      %v628 = vld [vmem:[%s599 + $0x20] sm:$0xff]
      %v629 = vld [vmem:[%s599 + $0x28] sm:$0xff]
      %v630 = vld [vmem:[%s599 + $0x30] sm:$0xff]
      %v631 = vld [vmem:[%s599 + $0x38] sm:$0xff]
      %v632 = vld [vmem:[%s599 + $0x40] sm:$0xff]
      %v633 = vld [vmem:[%s599 + $0x48] sm:$0xff]
      %v634 = vld [vmem:[%s599 + $0x50] sm:$0xff]
      %v635 = vld [vmem:[%s599 + $0x58] sm:$0xff]
      %637 = vset.pattern.permute.xlu0 0
      %638 = vperm.xlu0 %637, %v624
      %v639 = vpop.permute.xlu0 %638
      %642 = vset.pattern.permute.xlu0 0
      %643 = vperm.xlu0 %642, %v625
      %v644 = vpop.permute.xlu0 %643
      %647 = vset.pattern.permute.xlu0 0
      %648 = vperm.xlu0 %647, %v626
      %v649 = vpop.permute.xlu0 %648
      %652 = vset.pattern.permute.xlu0 0
      %653 = vperm.xlu0 %652, %v627
      %v654 = vpop.permute.xlu0 %653
      %657 = vset.pattern.permute.xlu0 0
      %658 = vperm.xlu0 %657, %v628
      %v659 = vpop.permute.xlu0 %658
      %662 = vset.pattern.permute.xlu0 0
      %663 = vperm.xlu0 %662, %v629
      %v664 = vpop.permute.xlu0 %663
      %667 = vset.pattern.permute.xlu0 0
      %668 = vperm.xlu0 %667, %v630
      %v669 = vpop.permute.xlu0 %668
      %672 = vset.pattern.permute.xlu0 0
      %673 = vperm.xlu0 %672, %v631
      %v674 = vpop.permute.xlu0 %673
      %677 = vset.pattern.permute.xlu0 0
      %678 = vperm.xlu0 %677, %v632
      %v679 = vpop.permute.xlu0 %678
      %682 = vset.pattern.permute.xlu0 0
      %683 = vperm.xlu0 %682, %v633
      %v684 = vpop.permute.xlu0 %683
      %687 = vset.pattern.permute.xlu0 0
      %688 = vperm.xlu0 %687, %v634
      %v689 = vpop.permute.xlu0 %688
      %692 = vset.pattern.permute.xlu0 0
      %693 = vperm.xlu0 %692, %v635
      %v694 = vpop.permute.xlu0 %693
      %v708 = vunpack.c.l.b16 %v612
      %v709 = vunpack.c.l.b16 %v613
      %v710 = vunpack.c.l.b16 %v614
      %v711 = vunpack.c.l.b16 %v615
      %v712 = vunpack.c.l.b16 %v616
      %v713 = vunpack.c.l.b16 %v617
      %v714 = vunpack.c.l.b16 %v618
      %v715 = vunpack.c.l.b16 %v619
      %v716 = vunpack.c.l.b16 %v620
      %v717 = vunpack.c.l.b16 %v621
      %v718 = vunpack.c.l.b16 %v622
      %v719 = vunpack.c.l.b16 %v623
      %v720 = vpack.c.b16 %v709, %v708
      %v721 = vpack.c.b16 %v711, %v710
      %v722 = vpack.c.b16 %v713, %v712
      %v723 = vpack.c.b16 %v715, %v714
      %v724 = vpack.c.b16 %v717, %v716
      %v725 = vpack.c.b16 %v719, %v718
      %v728 = vunpack.c.l.s4 1983009808
      %v729 = vunpack.c.0.s8 %v728
      %v730 = vlaneseq
      %v731 = vshrl.u32 %v730, 7
      %v732 = vsub.s32 %v729, %v731
      %v733 = vrot.slane %v611, %v732
      %v734 = vcombine.high %v733, %v733
      %vm735 = vcmask 23552
      %v737 = vsel %vm735, %v720, 0
      %v740 = vsel %vm735, %v721, 0
      %v743 = vsel %vm735, %v722, 0
      %v746 = vsel %vm735, %v723, 0
      %v749 = vsel %vm735, %v724, 0
      %v752 = vsel %vm735, %v725, 0
      %vm754 = vcmask 1040384
      %vm755 = vcmask 1041408
      %v756 = vsel %vm754, 4294967295, 65535
      %v757 = vsel %vm755, %v756, 0
      %v759 = vand.u32 %v733, %v757
      %v762 = vand.u32 %v734, %v757
      %764 = vmatprep.subr.bf16.mxu0 %v762
      %765 = vmatpush1.bf16.msra.mxu0 %v759
      %766 = vmatprep.subr.bf16.mxu0 0
      %767 = vmatpush1.bf16.msra.mxu0 0
      %768 = vmatprep.subr.bf16.mxu0 0
      %769 = vmatpush1.bf16.msra.mxu0 0
      %770 = vmatprep.subr.bf16.mxu0 0
      %771 = vmatpush1.bf16.msra.mxu0 0
      %772 = vmatprep.subr.bf16.mxu0 0
      %773 = vmatpush1.bf16.msra.mxu0 0
      %774 = vmatprep.subr.bf16.mxu0 0
      %775 = vmatpush1.bf16.msra.mxu0 0
      %776 = vmatprep.subr.bf16.mxu0 0
      %777 = vmatpush1.bf16.msra.mxu0 0
      %778 = vmatprep.subr.bf16.mxu0 0
      %779 = vmatpush1.bf16.msra.mxu0 0
      %780 = vmatprep.subr.bf16.mxu0 0
      %781 = vmatpush1.bf16.msra.mxu0 0
      %782 = vmatprep.subr.bf16.mxu0 0
      %783 = vmatpush1.bf16.msra.mxu0 0
      %784 = vmatprep.subr.bf16.mxu0 0
      %785 = vmatpush1.bf16.msra.mxu0 0
      %786 = vmatprep.subr.bf16.mxu0 0
      %787 = vmatpush1.bf16.msra.mxu0 0
      %788 = vmatprep.subr.bf16.mxu0 0
      %789 = vmatpush1.bf16.msra.mxu0 0
      %790 = vmatprep.subr.bf16.mxu0 0
      %791 = vmatpush1.bf16.msra.mxu0 0
      %792 = vmatprep.subr.bf16.mxu0 0
      %793 = vmatpush1.bf16.msra.mxu0 0
      %794 = vmatprep.subr.bf16.mxu0 0
      %795 = vmatpush1.bf16.msra.mxu0 0
      %796 = vmatprep.mubr.bf16.mxu0 0
      %797 = vmatmul.mubr.bf16.gmra.mrb[0].mxu0 %v737
      %v798 = vpop.f32.mrb[0].mxu0
      %v799 = vadd.f32 %v639, %v798
      %v800 = vpop.f32.mrb[0].mxu0
      %v801 = vadd.f32 %v639, %v800
      %v802 = vpop.f32.mrb[0].mxu0
      %v803 = vadd.f32 %v644, %v802
      %v804 = vpop.f32.mrb[0].mxu0
      %v805 = vadd.f32 %v644, %v804
      %806 = vmatprep.mubr.bf16.mxu0 0
      %807 = vmatmul.mubr.bf16.gmra.mrb[0].mxu0 %v740
      %v808 = vpop.f32.mrb[0].mxu0
      %v809 = vadd.f32 %v649, %v808
      %v810 = vpop.f32.mrb[0].mxu0
      %v811 = vadd.f32 %v649, %v810
      %v812 = vpop.f32.mrb[0].mxu0
      %v813 = vadd.f32 %v654, %v812
      %v814 = vpop.f32.mrb[0].mxu0
      %v815 = vadd.f32 %v654, %v814
      %816 = vmatprep.mubr.bf16.mxu0 0
      %817 = vmatmul.mubr.bf16.gmra.mrb[0].mxu0 %v743
      %v818 = vpop.f32.mrb[0].mxu0
      %v819 = vadd.f32 %v659, %v818
      %v820 = vpop.f32.mrb[0].mxu0
      %v821 = vadd.f32 %v659, %v820
      %v822 = vpop.f32.mrb[0].mxu0
      %v823 = vadd.f32 %v664, %v822
      %v824 = vpop.f32.mrb[0].mxu0
      %v825 = vadd.f32 %v664, %v824
      %826 = vmatprep.mubr.bf16.mxu0 0
      %827 = vmatmul.mubr.bf16.gmra.mrb[0].mxu0 %v746
      %v828 = vpop.f32.mrb[0].mxu0
      %v829 = vadd.f32 %v669, %v828
      %v830 = vpop.f32.mrb[0].mxu0
      %v831 = vadd.f32 %v669, %v830
      %v832 = vpop.f32.mrb[0].mxu0
      %v833 = vadd.f32 %v674, %v832
      %v834 = vpop.f32.mrb[0].mxu0
      %v835 = vadd.f32 %v674, %v834
      %836 = vmatprep.mubr.bf16.mxu0 0
      %837 = vmatmul.mubr.bf16.gmra.mrb[0].mxu0 %v749
      %v838 = vpop.f32.mrb[0].mxu0
      %v839 = vadd.f32 %v679, %v838
      %v840 = vpop.f32.mrb[0].mxu0
      %v841 = vadd.f32 %v679, %v840
      %v842 = vpop.f32.mrb[0].mxu0
      %v843 = vadd.f32 %v684, %v842
      %v844 = vpop.f32.mrb[0].mxu0
      %v845 = vadd.f32 %v684, %v844
      %846 = vmatprep.mubr.bf16.mxu0 0
      %847 = vmatmul.mubr.bf16.gmra.mrb[0].mxu0 %v752
      %v848 = vpop.f32.mrb[0].mxu0
      %v849 = vadd.f32 %v689, %v848
      %v850 = vpop.f32.mrb[0].mxu0
      %v851 = vadd.f32 %v689, %v850
      %v852 = vpop.f32.mrb[0].mxu0
      %v853 = vadd.f32 %v694, %v852
      %v854 = vpop.f32.mrb[0].mxu0
      %v855 = vadd.f32 %v694, %v854
      %856 = vdwg.mxu0
      %v857 = vld [vmem:[%s3] sm:$0xff]
      %v858 = vld [vmem:[%s3 + $0x8] sm:$0xff]
      %v859 = vld [vmem:[%s3 + $0x10] sm:$0xff]
      %v860 = vld [vmem:[%s3 + $0x18] sm:$0xff]
      %v861 = vld [vmem:[%s4] sm:$0xff]
      %v862 = vld [vmem:[%s4 + $0x8] sm:$0xff]
      %v863 = vld [vmem:[%s4 + $0x10] sm:$0xff]
      %v864 = vld [vmem:[%s4 + $0x18] sm:$0xff]
      %v865 = vld [vmem:[%s5] sm:$0xf]
      %v866 = vld [vmem:[%s5 + $0x4] sm:$0xf]
      %v867 = vld [vmem:[%s5 + $0x8] sm:$0xf]
      %v868 = vld [vmem:[%s5 + $0xc] sm:$0xf]
      %v869 = vld [vmem:[%s6] sm:$0xff]
      %v870 = vld [vmem:[%s6 + $0x8] sm:$0xff]
      %v871 = vld [vmem:[%s6 + $0x10] sm:$0xff]
      %v872 = vld [vmem:[%s6 + $0x18] sm:$0xff]
      %v873 = vld [vmem:[%s7] sm:$0xf]
      %v874 = vld [vmem:[%s7 + $0x4] sm:$0xf]
      %v875 = vld [vmem:[%s7 + $0x8] sm:$0xf]
      %v876 = vld [vmem:[%s7 + $0xc] sm:$0xf]
      %v877 = vld [vmem:[%s8] sm:$0xff]
      %v878 = vld [vmem:[%s8 + $0x8] sm:$0xff]
      %v879 = vld [vmem:[%s8 + $0x10] sm:$0xff]
      %v880 = vld [vmem:[%s8 + $0x18] sm:$0xff]
      %882 = vset.pattern.permute.xlu0 0
      %883 = vperm.xlu0 %882, %v857
      %v884 = vpop.permute.xlu0 %883
      %887 = vset.pattern.permute.xlu0 0
      %888 = vperm.xlu0 %887, %v858
      %v889 = vpop.permute.xlu0 %888
      %892 = vset.pattern.permute.xlu0 0
      %893 = vperm.xlu0 %892, %v859
      %v894 = vpop.permute.xlu0 %893
      %897 = vset.pattern.permute.xlu0 0
      %898 = vperm.xlu0 %897, %v860
      %v899 = vpop.permute.xlu0 %898
      %v901 = vmul.f32 %v799, %v884
      %v902 = vmul.f32 %v801, %v884
      %v903 = vmul.f32 %v803, %v889
      %v904 = vmul.f32 %v805, %v889
      %v905 = vmul.f32 %v809, %v894
      %v906 = vmul.f32 %v811, %v894
      %v907 = vmul.f32 %v813, %v899
      %v908 = vmul.f32 %v815, %v899
      %910 = vset.pattern.permute.xlu0 0
      %911 = vperm.xlu0 %910, %v861
      %v912 = vpop.permute.xlu0 %911
      %915 = vset.pattern.permute.xlu0 0
      %916 = vperm.xlu0 %915, %v862
      %v917 = vpop.permute.xlu0 %916
      %920 = vset.pattern.permute.xlu0 0
      %921 = vperm.xlu0 %920, %v863
      %v922 = vpop.permute.xlu0 %921
      %925 = vset.pattern.permute.xlu0 0
      %926 = vperm.xlu0 %925, %v864
      %v927 = vpop.permute.xlu0 %926
      %v929 = vadd.f32 %v901, %v912
      %v930 = vadd.f32 %v902, %v912
      %v931 = vadd.f32 %v903, %v917
      %v932 = vadd.f32 %v904, %v917
      %v933 = vadd.f32 %v905, %v922
      %v934 = vadd.f32 %v906, %v922
      %v935 = vadd.f32 %v907, %v927
      %v936 = vadd.f32 %v908, %v927
      %v937 = vmax.f32 %v929, 0.0
      %v938 = vmax.f32 %v930, 0.0
      %v939 = vmax.f32 %v931, 0.0
      %v940 = vmax.f32 %v932, 0.0
      %v941 = vmax.f32 %v933, 0.0
      %v942 = vmax.f32 %v934, 0.0
      %v943 = vmax.f32 %v935, 0.0
      %v944 = vmax.f32 %v936, 0.0
      %v945 = vpack.c.bf16 %v939, %v937
      %v946 = vpack.c.bf16 %v940, %v938
      %v947 = vpack.c.bf16 %v943, %v941
      %v948 = vpack.c.bf16 %v944, %v942
      %950 = vset.pattern.permute.xlu0 0
      %951 = vperm.xlu0 %950, %v869
      %v952 = vpop.permute.xlu0 %951
      %955 = vset.pattern.permute.xlu0 0
      %956 = vperm.xlu0 %955, %v870
      %v957 = vpop.permute.xlu0 %956
      %960 = vset.pattern.permute.xlu0 0
      %961 = vperm.xlu0 %960, %v871
      %v962 = vpop.permute.xlu0 %961
      %965 = vset.pattern.permute.xlu0 0
      %966 = vperm.xlu0 %965, %v872
      %v967 = vpop.permute.xlu0 %966
      %v973 = vunpack.c.l.b16 %v865
      %v974 = vunpack.c.l.b16 %v866
      %v975 = vunpack.c.l.b16 %v867
      %v976 = vunpack.c.l.b16 %v868
      %v977 = vpack.c.b16 %v974, %v973
      %v978 = vpack.c.b16 %v976, %v975
      %vm979 = vcmask 261120
      %v981 = vsel %vm979, %v977, 0
      %v984 = vsel %vm979, %v978, 0
      %986 = vmatprep.subr.bf16.mxu0 %v946
      %987 = vmatpush1.bf16.msra.mxu0 %v945
      %988 = vmatprep.subr.bf16.mxu0 %v948
      %989 = vmatpush1.bf16.msra.mxu0 %v947
      %990 = vmatprep.subr.bf16.mxu0 0
      %991 = vmatpush1.bf16.msra.mxu0 0
      %992 = vmatprep.subr.bf16.mxu0 0
      %993 = vmatpush1.bf16.msra.mxu0 0
      %994 = vmatprep.subr.bf16.mxu0 0
      %995 = vmatpush1.bf16.msra.mxu0 0
      %996 = vmatprep.subr.bf16.mxu0 0
      %997 = vmatpush1.bf16.msra.mxu0 0
      %998 = vmatprep.subr.bf16.mxu0 0
      %999 = vmatpush1.bf16.msra.mxu0 0
      %1000 = vmatprep.subr.bf16.mxu0 0
      %1001 = vmatpush1.bf16.msra.mxu0 0
      %1002 = vmatprep.subr.bf16.mxu0 0
      %1003 = vmatpush1.bf16.msra.mxu0 0
      %1004 = vmatprep.subr.bf16.mxu0 0
      %1005 = vmatpush1.bf16.msra.mxu0 0
      %1006 = vmatprep.subr.bf16.mxu0 0
      %1007 = vmatpush1.bf16.msra.mxu0 0
      %1008 = vmatprep.subr.bf16.mxu0 0
      %1009 = vmatpush1.bf16.msra.mxu0 0
      %1010 = vmatprep.subr.bf16.mxu0 0
      %1011 = vmatpush1.bf16.msra.mxu0 0
      %1012 = vmatprep.subr.bf16.mxu0 0
      %1013 = vmatpush1.bf16.msra.mxu0 0
      %1014 = vmatprep.subr.bf16.mxu0 0
      %1015 = vmatpush1.bf16.msra.mxu0 0
      %1016 = vmatprep.subr.bf16.mxu0 0
      %1017 = vmatpush1.bf16.msra.mxu0 0
      %1018 = vmatprep.mubr.bf16.mxu0 0
      %1019 = vmatmul.mubr.bf16.gmra.mrb[0].mxu0 %v981
      %v1020 = vpop.f32.mrb[0].mxu0
      %v1021 = vadd.f32 %v952, %v1020
      %v1022 = vpop.f32.mrb[0].mxu0
      %v1023 = vadd.f32 %v952, %v1022
      %v1024 = vpop.f32.mrb[0].mxu0
      %v1025 = vadd.f32 %v957, %v1024
      %v1026 = vpop.f32.mrb[0].mxu0
      %v1027 = vadd.f32 %v957, %v1026
      %1028 = vmatprep.mubr.bf16.mxu0 0
      %1029 = vmatmul.mubr.bf16.gmra.mrb[0].mxu0 %v984
      %v1030 = vpop.f32.mrb[0].mxu0
      %v1031 = vadd.f32 %v962, %v1030
      %v1032 = vpop.f32.mrb[0].mxu0
      %v1033 = vadd.f32 %v962, %v1032
      %v1034 = vpop.f32.mrb[0].mxu0
      %v1035 = vadd.f32 %v967, %v1034
      %v1036 = vpop.f32.mrb[0].mxu0
      %v1037 = vadd.f32 %v967, %v1036
      %1038 = vdwg.mxu0
      %v1039 = vmax.f32 %v1021, 0.0
      %v1040 = vmax.f32 %v1023, 0.0
      %v1041 = vmax.f32 %v1025, 0.0
      %v1042 = vmax.f32 %v1027, 0.0
      %v1043 = vmax.f32 %v1031, 0.0
      %v1044 = vmax.f32 %v1033, 0.0
      %v1045 = vmax.f32 %v1035, 0.0
      %v1046 = vmax.f32 %v1037, 0.0
      %v1047 = vpack.c.bf16 %v1041, %v1039
      %v1048 = vpack.c.bf16 %v1042, %v1040
      %v1049 = vpack.c.bf16 %v1045, %v1043
      %v1050 = vpack.c.bf16 %v1046, %v1044
      %1052 = vset.pattern.permute.xlu0 0
      %1053 = vperm.xlu0 %1052, %v877
      %v1054 = vpop.permute.xlu0 %1053
      %1057 = vset.pattern.permute.xlu0 0
      %1058 = vperm.xlu0 %1057, %v878
      %v1059 = vpop.permute.xlu0 %1058
      %1062 = vset.pattern.permute.xlu0 0
      %1063 = vperm.xlu0 %1062, %v879
      %v1064 = vpop.permute.xlu0 %1063
      %1067 = vset.pattern.permute.xlu0 0
      %1068 = vperm.xlu0 %1067, %v880
      %v1069 = vpop.permute.xlu0 %1068
      %v1075 = vunpack.c.l.b16 %v873
      %v1076 = vunpack.c.l.b16 %v874
      %v1077 = vunpack.c.l.b16 %v875
      %v1078 = vunpack.c.l.b16 %v876
      %v1079 = vpack.c.b16 %v1076, %v1075
      %v1080 = vpack.c.b16 %v1078, %v1077
      %v1082 = vsel %vm979, %v1079, 0
      %v1085 = vsel %vm979, %v1080, 0
      %1087 = vmatprep.subr.bf16.mxu0 %v1048
      %1088 = vmatpush1.bf16.msra.mxu0 %v1047
      %1089 = vmatprep.subr.bf16.mxu0 %v1050
      %1090 = vmatpush1.bf16.msra.mxu0 %v1049
      %1091 = vmatprep.subr.bf16.mxu0 0
      %1092 = vmatpush1.bf16.msra.mxu0 0
      %1093 = vmatprep.subr.bf16.mxu0 0
      %1094 = vmatpush1.bf16.msra.mxu0 0
      %1095 = vmatprep.subr.bf16.mxu0 0
      %1096 = vmatpush1.bf16.msra.mxu0 0
      %1097 = vmatprep.subr.bf16.mxu0 0
      %1098 = vmatpush1.bf16.msra.mxu0 0
      %1099 = vmatprep.subr.bf16.mxu0 0
      %1100 = vmatpush1.bf16.msra.mxu0 0
      %1101 = vmatprep.subr.bf16.mxu0 0
      %1102 = vmatpush1.bf16.msra.mxu0 0
      %1103 = vmatprep.subr.bf16.mxu0 0
      %1104 = vmatpush1.bf16.msra.mxu0 0
      %1105 = vmatprep.subr.bf16.mxu0 0
      %1106 = vmatpush1.bf16.msra.mxu0 0
      %1107 = vmatprep.subr.bf16.mxu0 0
      %1108 = vmatpush1.bf16.msra.mxu0 0
      %1109 = vmatprep.subr.bf16.mxu0 0
      %1110 = vmatpush1.bf16.msra.mxu0 0
      %1111 = vmatprep.subr.bf16.mxu0 0
      %1112 = vmatpush1.bf16.msra.mxu0 0
      %1113 = vmatprep.subr.bf16.mxu0 0
      %1114 = vmatpush1.bf16.msra.mxu0 0
      %1115 = vmatprep.subr.bf16.mxu0 0
      %1116 = vmatpush1.bf16.msra.mxu0 0
      %1117 = vmatprep.subr.bf16.mxu0 0
      %1118 = vmatpush1.bf16.msra.mxu0 0
      %1119 = vmatprep.mubr.bf16.mxu0 0
      %1120 = vmatmul.mubr.bf16.gmra.mrb[0].mxu0 %v1082
      %v1121 = vpop.f32.mrb[0].mxu0
      %v1122 = vadd.f32 %v1054, %v1121
      %v1123 = vpop.f32.mrb[0].mxu0
      %v1124 = vadd.f32 %v1054, %v1123
      %v1125 = vpop.f32.mrb[0].mxu0
      %v1126 = vadd.f32 %v1059, %v1125
      %v1127 = vpop.f32.mrb[0].mxu0
      %v1128 = vadd.f32 %v1059, %v1127
      %1129 = vmatprep.mubr.bf16.mxu0 0
      %1130 = vmatmul.mubr.bf16.gmra.mrb[0].mxu0 %v1085
      %v1131 = vpop.f32.mrb[0].mxu0
      %v1132 = vadd.f32 %v1064, %v1131
      %v1133 = vpop.f32.mrb[0].mxu0
      %v1134 = vadd.f32 %v1064, %v1133
      %v1135 = vpop.f32.mrb[0].mxu0
      %v1136 = vadd.f32 %v1069, %v1135
      %v1137 = vpop.f32.mrb[0].mxu0
      %v1138 = vadd.f32 %v1069, %v1137
      %1139 = vdwg.mxu0
      %v1140 = vadd.f32 %v799, %v1122
      %v1141 = vadd.f32 %v801, %v1124
      %v1142 = vadd.f32 %v803, %v1126
      %v1143 = vadd.f32 %v805, %v1128
      %v1144 = vadd.f32 %v809, %v1132
      %v1145 = vadd.f32 %v811, %v1134
      %v1146 = vadd.f32 %v813, %v1136
      %v1147 = vadd.f32 %v815, %v1138
      %v1148 = vadd.f32 %v1140, %v819
      %v1149 = vadd.f32 %v1141, %v821
      %v1150 = vadd.f32 %v1142, %v823
      %v1151 = vadd.f32 %v1143, %v825
      %v1152 = vadd.f32 %v1144, %v829
      %v1153 = vadd.f32 %v1145, %v831
      %v1154 = vadd.f32 %v1146, %v833
      %v1155 = vadd.f32 %v1147, %v835
      %s1156 = scalar_lea.vmem %s3, 32
      %v1157 = vld [vmem:[%s1156] sm:$0xff]
      %v1158 = vld [vmem:[%s1156 + $0x8] sm:$0xff]
      %v1159 = vld [vmem:[%s1156 + $0x10] sm:$0xff]
      %v1160 = vld [vmem:[%s1156 + $0x18] sm:$0xff]
      %s1161 = scalar_lea.vmem %s4, 32
      %v1162 = vld [vmem:[%s1161] sm:$0xff]
      %v1163 = vld [vmem:[%s1161 + $0x8] sm:$0xff]
      %v1164 = vld [vmem:[%s1161 + $0x10] sm:$0xff]
      %v1165 = vld [vmem:[%s1161 + $0x18] sm:$0xff]
      %s1166 = scalar_lea.vmem %s5, 16
      %v1167 = vld [vmem:[%s1166] sm:$0xf]
      %v1168 = vld [vmem:[%s1166 + $0x4] sm:$0xf]
      %v1169 = vld [vmem:[%s1166 + $0x8] sm:$0xf]
      %v1170 = vld [vmem:[%s1166 + $0xc] sm:$0xf]
      %s1171 = scalar_lea.vmem %s6, 32
      %v1172 = vld [vmem:[%s1171] sm:$0xff]
      %v1173 = vld [vmem:[%s1171 + $0x8] sm:$0xff]
      %v1174 = vld [vmem:[%s1171 + $0x10] sm:$0xff]
      %v1175 = vld [vmem:[%s1171 + $0x18] sm:$0xff]
      %s1176 = scalar_lea.vmem %s7, 16
      %v1177 = vld [vmem:[%s1176] sm:$0xf]
      %v1178 = vld [vmem:[%s1176 + $0x4] sm:$0xf]
      %v1179 = vld [vmem:[%s1176 + $0x8] sm:$0xf]
      %v1180 = vld [vmem:[%s1176 + $0xc] sm:$0xf]
      %s1181 = scalar_lea.vmem %s8, 32
      %v1182 = vld [vmem:[%s1181] sm:$0xff]
      %v1183 = vld [vmem:[%s1181 + $0x8] sm:$0xff]
      %v1184 = vld [vmem:[%s1181 + $0x10] sm:$0xff]
      %v1185 = vld [vmem:[%s1181 + $0x18] sm:$0xff]
      %1187 = vset.pattern.permute.xlu0 0
      %1188 = vperm.xlu0 %1187, %v1157
      %v1189 = vpop.permute.xlu0 %1188
      %1192 = vset.pattern.permute.xlu0 0
      %1193 = vperm.xlu0 %1192, %v1158
      %v1194 = vpop.permute.xlu0 %1193
      %1197 = vset.pattern.permute.xlu0 0
      %1198 = vperm.xlu0 %1197, %v1159
      %v1199 = vpop.permute.xlu0 %1198
      %1202 = vset.pattern.permute.xlu0 0
      %1203 = vperm.xlu0 %1202, %v1160
      %v1204 = vpop.permute.xlu0 %1203
      %v1206 = vmul.f32 %v1148, %v1189
      %v1207 = vmul.f32 %v1149, %v1189
      %v1208 = vmul.f32 %v1150, %v1194
      %v1209 = vmul.f32 %v1151, %v1194
      %v1210 = vmul.f32 %v1152, %v1199
      %v1211 = vmul.f32 %v1153, %v1199
      %v1212 = vmul.f32 %v1154, %v1204
      %v1213 = vmul.f32 %v1155, %v1204
      %1215 = vset.pattern.permute.xlu0 0
      %1216 = vperm.xlu0 %1215, %v1162
      %v1217 = vpop.permute.xlu0 %1216
      %1220 = vset.pattern.permute.xlu0 0
      %1221 = vperm.xlu0 %1220, %v1163
      %v1222 = vpop.permute.xlu0 %1221
      %1225 = vset.pattern.permute.xlu0 0
      %1226 = vperm.xlu0 %1225, %v1164
      %v1227 = vpop.permute.xlu0 %1226
      %1230 = vset.pattern.permute.xlu0 0
      %1231 = vperm.xlu0 %1230, %v1165
      %v1232 = vpop.permute.xlu0 %1231
      %v1234 = vadd.f32 %v1206, %v1217
      %v1235 = vadd.f32 %v1207, %v1217
      %v1236 = vadd.f32 %v1208, %v1222
      %v1237 = vadd.f32 %v1209, %v1222
      %v1238 = vadd.f32 %v1210, %v1227
      %v1239 = vadd.f32 %v1211, %v1227
      %v1240 = vadd.f32 %v1212, %v1232
      %v1241 = vadd.f32 %v1213, %v1232
      %v1242 = vmax.f32 %v1234, 0.0
      %v1243 = vmax.f32 %v1235, 0.0
      %v1244 = vmax.f32 %v1236, 0.0
      %v1245 = vmax.f32 %v1237, 0.0
      %v1246 = vmax.f32 %v1238, 0.0
      %v1247 = vmax.f32 %v1239, 0.0
      %v1248 = vmax.f32 %v1240, 0.0
      %v1249 = vmax.f32 %v1241, 0.0
      %v1250 = vpack.c.bf16 %v1244, %v1242
      %v1251 = vpack.c.bf16 %v1245, %v1243
      %v1252 = vpack.c.bf16 %v1248, %v1246
      %v1253 = vpack.c.bf16 %v1249, %v1247
      %1255 = vset.pattern.permute.xlu0 0
      %1256 = vperm.xlu0 %1255, %v1172
      %v1257 = vpop.permute.xlu0 %1256
      %1260 = vset.pattern.permute.xlu0 0
      %1261 = vperm.xlu0 %1260, %v1173
      %v1262 = vpop.permute.xlu0 %1261
      %1265 = vset.pattern.permute.xlu0 0
      %1266 = vperm.xlu0 %1265, %v1174
      %v1267 = vpop.permute.xlu0 %1266
      %1270 = vset.pattern.permute.xlu0 0
      %1271 = vperm.xlu0 %1270, %v1175
      %v1272 = vpop.permute.xlu0 %1271
      %v1278 = vunpack.c.l.b16 %v1167
      %v1279 = vunpack.c.l.b16 %v1168
      %v1280 = vunpack.c.l.b16 %v1169
      %v1281 = vunpack.c.l.b16 %v1170
      %v1282 = vpack.c.b16 %v1279, %v1278
      %v1283 = vpack.c.b16 %v1281, %v1280
      %v1285 = vsel %vm979, %v1282, 0
      %v1288 = vsel %vm979, %v1283, 0
      %1290 = vmatprep.subr.bf16.mxu0 %v1251
      %1291 = vmatpush1.bf16.msra.mxu0 %v1250
      %1292 = vmatprep.subr.bf16.mxu0 %v1253
      %1293 = vmatpush1.bf16.msra.mxu0 %v1252
      %1294 = vmatprep.subr.bf16.mxu0 0
      %1295 = vmatpush1.bf16.msra.mxu0 0
      %1296 = vmatprep.subr.bf16.mxu0 0
      %1297 = vmatpush1.bf16.msra.mxu0 0
      %1298 = vmatprep.subr.bf16.mxu0 0
      %1299 = vmatpush1.bf16.msra.mxu0 0
      %1300 = vmatprep.subr.bf16.mxu0 0
      %1301 = vmatpush1.bf16.msra.mxu0 0
      %1302 = vmatprep.subr.bf16.mxu0 0
      %1303 = vmatpush1.bf16.msra.mxu0 0
      %1304 = vmatprep.subr.bf16.mxu0 0
      %1305 = vmatpush1.bf16.msra.mxu0 0
      %1306 = vmatprep.subr.bf16.mxu0 0
      %1307 = vmatpush1.bf16.msra.mxu0 0
      %1308 = vmatprep.subr.bf16.mxu0 0
      %1309 = vmatpush1.bf16.msra.mxu0 0
      %1310 = vmatprep.subr.bf16.mxu0 0
      %1311 = vmatpush1.bf16.msra.mxu0 0
      %1312 = vmatprep.subr.bf16.mxu0 0
      %1313 = vmatpush1.bf16.msra.mxu0 0
      %1314 = vmatprep.subr.bf16.mxu0 0
      %1315 = vmatpush1.bf16.msra.mxu0 0
      %1316 = vmatprep.subr.bf16.mxu0 0
      %1317 = vmatpush1.bf16.msra.mxu0 0
      %1318 = vmatprep.subr.bf16.mxu0 0
      %1319 = vmatpush1.bf16.msra.mxu0 0
      %1320 = vmatprep.subr.bf16.mxu0 0
      %1321 = vmatpush1.bf16.msra.mxu0 0
      %1322 = vmatprep.mubr.bf16.mxu0 0
      %1323 = vmatmul.mubr.bf16.gmra.mrb[0].mxu0 %v1285
      %v1324 = vpop.f32.mrb[0].mxu0
      %v1325 = vadd.f32 %v1257, %v1324
      %v1326 = vpop.f32.mrb[0].mxu0
      %v1327 = vadd.f32 %v1257, %v1326
      %v1328 = vpop.f32.mrb[0].mxu0
      %v1329 = vadd.f32 %v1262, %v1328
      %v1330 = vpop.f32.mrb[0].mxu0
      %v1331 = vadd.f32 %v1262, %v1330
      %1332 = vmatprep.mubr.bf16.mxu0 0
      %1333 = vmatmul.mubr.bf16.gmra.mrb[0].mxu0 %v1288
      %v1334 = vpop.f32.mrb[0].mxu0
      %v1335 = vadd.f32 %v1267, %v1334
      %v1336 = vpop.f32.mrb[0].mxu0
      %v1337 = vadd.f32 %v1267, %v1336
      %v1338 = vpop.f32.mrb[0].mxu0
      %v1339 = vadd.f32 %v1272, %v1338
      %v1340 = vpop.f32.mrb[0].mxu0
      %v1341 = vadd.f32 %v1272, %v1340
      %1342 = vdwg.mxu0
      %v1343 = vmax.f32 %v1325, 0.0
      %v1344 = vmax.f32 %v1327, 0.0
      %v1345 = vmax.f32 %v1329, 0.0
      %v1346 = vmax.f32 %v1331, 0.0
      %v1347 = vmax.f32 %v1335, 0.0
      %v1348 = vmax.f32 %v1337, 0.0
      %v1349 = vmax.f32 %v1339, 0.0
      %v1350 = vmax.f32 %v1341, 0.0
      %v1351 = vpack.c.bf16 %v1345, %v1343
      %v1352 = vpack.c.bf16 %v1346, %v1344
      %v1353 = vpack.c.bf16 %v1349, %v1347
      %v1354 = vpack.c.bf16 %v1350, %v1348
      %1356 = vset.pattern.permute.xlu0 0
      %1357 = vperm.xlu0 %1356, %v1182
      %v1358 = vpop.permute.xlu0 %1357
      %1361 = vset.pattern.permute.xlu0 0
      %1362 = vperm.xlu0 %1361, %v1183
      %v1363 = vpop.permute.xlu0 %1362
      %1366 = vset.pattern.permute.xlu0 0
      %1367 = vperm.xlu0 %1366, %v1184
      %v1368 = vpop.permute.xlu0 %1367
      %1371 = vset.pattern.permute.xlu0 0
      %1372 = vperm.xlu0 %1371, %v1185
      %v1373 = vpop.permute.xlu0 %1372
      %v1379 = vunpack.c.l.b16 %v1177
      %v1380 = vunpack.c.l.b16 %v1178
      %v1381 = vunpack.c.l.b16 %v1179
      %v1382 = vunpack.c.l.b16 %v1180
      %v1383 = vpack.c.b16 %v1380, %v1379
      %v1384 = vpack.c.b16 %v1382, %v1381
      %v1386 = vsel %vm979, %v1383, 0
      %v1389 = vsel %vm979, %v1384, 0
      %1391 = vmatprep.subr.bf16.mxu0 %v1352
      %1392 = vmatpush1.bf16.msra.mxu0 %v1351
      %1393 = vmatprep.subr.bf16.mxu0 %v1354
      %1394 = vmatpush1.bf16.msra.mxu0 %v1353
      %1395 = vmatprep.subr.bf16.mxu0 0
      %1396 = vmatpush1.bf16.msra.mxu0 0
      %1397 = vmatprep.subr.bf16.mxu0 0
      %1398 = vmatpush1.bf16.msra.mxu0 0
      %1399 = vmatprep.subr.bf16.mxu0 0
      %1400 = vmatpush1.bf16.msra.mxu0 0
      %1401 = vmatprep.subr.bf16.mxu0 0
      %1402 = vmatpush1.bf16.msra.mxu0 0
      %1403 = vmatprep.subr.bf16.mxu0 0
      %1404 = vmatpush1.bf16.msra.mxu0 0
      %1405 = vmatprep.subr.bf16.mxu0 0
      %1406 = vmatpush1.bf16.msra.mxu0 0
      %1407 = vmatprep.subr.bf16.mxu0 0
      %1408 = vmatpush1.bf16.msra.mxu0 0
      %1409 = vmatprep.subr.bf16.mxu0 0
      %1410 = vmatpush1.bf16.msra.mxu0 0
      %1411 = vmatprep.subr.bf16.mxu0 0
      %1412 = vmatpush1.bf16.msra.mxu0 0
      %1413 = vmatprep.subr.bf16.mxu0 0
      %1414 = vmatpush1.bf16.msra.mxu0 0
      %1415 = vmatprep.subr.bf16.mxu0 0
      %1416 = vmatpush1.bf16.msra.mxu0 0
      %1417 = vmatprep.subr.bf16.mxu0 0
      %1418 = vmatpush1.bf16.msra.mxu0 0
      %1419 = vmatprep.subr.bf16.mxu0 0
      %1420 = vmatpush1.bf16.msra.mxu0 0
      %1421 = vmatprep.subr.bf16.mxu0 0
      %1422 = vmatpush1.bf16.msra.mxu0 0
      %1423 = vmatprep.mubr.bf16.mxu0 0
      %1424 = vmatmul.mubr.bf16.gmra.mrb[0].mxu0 %v1386
      %v1425 = vpop.f32.mrb[0].mxu0
      %v1426 = vadd.f32 %v1358, %v1425
      %v1427 = vpop.f32.mrb[0].mxu0
      %v1428 = vadd.f32 %v1358, %v1427
      %v1429 = vpop.f32.mrb[0].mxu0
      %v1430 = vadd.f32 %v1363, %v1429
      %v1431 = vpop.f32.mrb[0].mxu0
      %v1432 = vadd.f32 %v1363, %v1431
      %1433 = vmatprep.mubr.bf16.mxu0 0
      %1434 = vmatmul.mubr.bf16.gmra.mrb[0].mxu0 %v1389
      %v1435 = vpop.f32.mrb[0].mxu0
      %v1436 = vadd.f32 %v1368, %v1435
      %v1437 = vpop.f32.mrb[0].mxu0
      %v1438 = vadd.f32 %v1368, %v1437
      %v1439 = vpop.f32.mrb[0].mxu0
      %v1440 = vadd.f32 %v1373, %v1439
      %v1441 = vpop.f32.mrb[0].mxu0
      %v1442 = vadd.f32 %v1373, %v1441
      %1443 = vdwg.mxu0
      %v1444 = vadd.f32 %v1148, %v1426
      %v1445 = vadd.f32 %v1149, %v1428
      %v1446 = vadd.f32 %v1150, %v1430
      %v1447 = vadd.f32 %v1151, %v1432
      %v1448 = vadd.f32 %v1152, %v1436
      %v1449 = vadd.f32 %v1153, %v1438
      %v1450 = vadd.f32 %v1154, %v1440
      %v1451 = vadd.f32 %v1155, %v1442
      %v1452 = vadd.f32 %v1444, %v839
      %v1453 = vadd.f32 %v1445, %v841
      %v1454 = vadd.f32 %v1446, %v843
      %v1455 = vadd.f32 %v1447, %v845
      %v1456 = vadd.f32 %v1448, %v849
      %v1457 = vadd.f32 %v1449, %v851
      %v1458 = vadd.f32 %v1450, %v853
      %v1459 = vadd.f32 %v1451, %v855
      %v1460 = vld [vmem:[%s9] sm:$0xff]
      %v1461 = vld [vmem:[%s9 + $0x8] sm:$0xff]
      %v1462 = vld [vmem:[%s9 + $0x10] sm:$0xff]
      %v1463 = vld [vmem:[%s9 + $0x18] sm:$0xff]
      %1465 = vset.pattern.permute.xlu0 0
      %1466 = vperm.xlu0 %1465, %v1460
      %v1467 = vpop.permute.xlu0 %1466
      %1470 = vset.pattern.permute.xlu0 0
      %1471 = vperm.xlu0 %1470, %v1461
      %v1472 = vpop.permute.xlu0 %1471
      %1475 = vset.pattern.permute.xlu0 0
      %1476 = vperm.xlu0 %1475, %v1462
      %v1477 = vpop.permute.xlu0 %1476
      %1480 = vset.pattern.permute.xlu0 0
      %1481 = vperm.xlu0 %1480, %v1463
      %v1482 = vpop.permute.xlu0 %1481
      %v1484 = vmul.f32 %v1452, %v1467
      %v1485 = vmul.f32 %v1453, %v1467
      %v1486 = vmul.f32 %v1454, %v1472
      %v1487 = vmul.f32 %v1455, %v1472
      %v1488 = vmul.f32 %v1456, %v1477
      %v1489 = vmul.f32 %v1457, %v1477
      %v1490 = vmul.f32 %v1458, %v1482
      %v1491 = vmul.f32 %v1459, %v1482
      %v1492 = vld [vmem:[%s10] sm:$0xff]
      %v1493 = vld [vmem:[%s10 + $0x8] sm:$0xff]
      %v1494 = vld [vmem:[%s10 + $0x10] sm:$0xff]
      %v1495 = vld [vmem:[%s10 + $0x18] sm:$0xff]
      %1497 = vset.pattern.permute.xlu0 0
      %1498 = vperm.xlu0 %1497, %v1492
      %v1499 = vpop.permute.xlu0 %1498
      %1502 = vset.pattern.permute.xlu0 0
      %1503 = vperm.xlu0 %1502, %v1493
      %v1504 = vpop.permute.xlu0 %1503
      %1507 = vset.pattern.permute.xlu0 0
      %1508 = vperm.xlu0 %1507, %v1494
      %v1509 = vpop.permute.xlu0 %1508
      %1512 = vset.pattern.permute.xlu0 0
      %1513 = vperm.xlu0 %1512, %v1495
      %v1514 = vpop.permute.xlu0 %1513
      %v1516 = vadd.f32 %v1484, %v1499
      %v1517 = vadd.f32 %v1485, %v1499
      %v1518 = vadd.f32 %v1486, %v1504
      %v1519 = vadd.f32 %v1487, %v1504
      %v1520 = vadd.f32 %v1488, %v1509
      %v1521 = vadd.f32 %v1489, %v1509
      %v1522 = vadd.f32 %v1490, %v1514
      %v1523 = vadd.f32 %v1491, %v1514
      %v1524 = vmax.f32 %v1516, 0.0
      %v1525 = vmax.f32 %v1517, 0.0
      %v1526 = vmax.f32 %v1518, 0.0
      %v1527 = vmax.f32 %v1519, 0.0
      %v1528 = vmax.f32 %v1520, 0.0
      %v1529 = vmax.f32 %v1521, 0.0
      %v1530 = vmax.f32 %v1522, 0.0
      %v1531 = vmax.f32 %v1523, 0.0
      %v1532 = vld [vmem:[%s11] sm:$0x1]
      %v1533 = vpack.c.bf16 %v1526, %v1524
      %v1534 = vpack.c.bf16 %v1527, %v1525
      %v1535 = vpack.c.bf16 %v1530, %v1528
      %v1536 = vpack.c.bf16 %v1531, %v1529
      %v1537 = vld [vmem:[#allocation2] sm:$0x1]
      %1539 = vset.pattern.permute.xlu0 0
      %1540 = vperm.xlu0 %1539, %v1537
      %v1541 = vpop.permute.xlu0 %1540
      %v1543 = vlaneseq
      %v1544 = vshrl.u32 %v1543, 7
      %v1545 = vsub.s32 0, %v1544
      %v1546 = vrot.slane %v1541, %v1545
      %v1548 = vsel %vm979, %v1532, 0
      %1550 = vmatprep.subr.bf16.mxu0 %v1534
      %1551 = vmatpush1.bf16.msra.mxu0 %v1533
      %1552 = vmatprep.subr.bf16.mxu0 %v1536
      %1553 = vmatpush1.bf16.msra.mxu0 %v1535
      %1554 = vmatprep.subr.bf16.mxu0 0
      %1555 = vmatpush1.bf16.msra.mxu0 0
      %1556 = vmatprep.subr.bf16.mxu0 0
      %1557 = vmatpush1.bf16.msra.mxu0 0
      %1558 = vmatprep.subr.bf16.mxu0 0
      %1559 = vmatpush1.bf16.msra.mxu0 0
      %1560 = vmatprep.subr.bf16.mxu0 0
      %1561 = vmatpush1.bf16.msra.mxu0 0
      %1562 = vmatprep.subr.bf16.mxu0 0
      %1563 = vmatpush1.bf16.msra.mxu0 0
      %1564 = vmatprep.subr.bf16.mxu0 0
      %1565 = vmatpush1.bf16.msra.mxu0 0
      %1566 = vmatprep.subr.bf16.mxu0 0
      %1567 = vmatpush1.bf16.msra.mxu0 0
      %1568 = vmatprep.subr.bf16.mxu0 0
      %1569 = vmatpush1.bf16.msra.mxu0 0
      %1570 = vmatprep.subr.bf16.mxu0 0
      %1571 = vmatpush1.bf16.msra.mxu0 0
      %1572 = vmatprep.subr.bf16.mxu0 0
      %1573 = vmatpush1.bf16.msra.mxu0 0
      %1574 = vmatprep.subr.bf16.mxu0 0
      %1575 = vmatpush1.bf16.msra.mxu0 0
      %1576 = vmatprep.subr.bf16.mxu0 0
      %1577 = vmatpush1.bf16.msra.mxu0 0
      %1578 = vmatprep.subr.bf16.mxu0 0
      %1579 = vmatpush1.bf16.msra.mxu0 0
      %1580 = vmatprep.subr.bf16.mxu0 0
      %1581 = vmatpush1.bf16.msra.mxu0 0
      %1582 = vmatprep.mubr.bf16.mxu0 0
      %1583 = vmatmul.mubr.bf16.gmra.mrb[0].mxu0 %v1548
      %v1584 = vpop.f32.mrb[0].mxu0
      %v1585 = vadd.f32 %v1546, %v1584
      %v1586 = vpop.f32.mrb[0].mxu0
      %v1587 = vadd.f32 %v1546, %v1586
      %v1588 = vpop.f32.mrb[0].mxu0
      %v1589 = vpop.f32.mrb[0].mxu0
      %1590 = vdwg.mxu0
      %v1591 = vld [vmem:[%s13] sm:$0xff]
      %v1592 = vld [vmem:[%s13 + $0x8] sm:$0xff]
      %v1593 = vld [vmem:[%s13 + $0x10] sm:$0xff]
      %v1594 = vld [vmem:[%s13 + $0x18] sm:$0xff]
      %1596 = vset.pattern.permute.xlu0 0
      %1597 = vperm.xlu0 %1596, %v1591
      %v1598 = vpop.permute.xlu0 %1597
      %1601 = vset.pattern.permute.xlu0 0
      %1602 = vperm.xlu0 %1601, %v1592
      %v1603 = vpop.permute.xlu0 %1602
      %1606 = vset.pattern.permute.xlu0 0
      %1607 = vperm.xlu0 %1606, %v1593
      %v1608 = vpop.permute.xlu0 %1607
      %1611 = vset.pattern.permute.xlu0 0
      %1612 = vperm.xlu0 %1611, %v1594
      %v1613 = vpop.permute.xlu0 %1612
      %v1615 = vmul.f32 %v1452, %v1598
      %v1616 = vmul.f32 %v1453, %v1598
      %v1617 = vmul.f32 %v1454, %v1603
      %v1618 = vmul.f32 %v1455, %v1603
      %v1619 = vmul.f32 %v1456, %v1608
      %v1620 = vmul.f32 %v1457, %v1608
      %v1621 = vmul.f32 %v1458, %v1613
      %v1622 = vmul.f32 %v1459, %v1613
      %v1623 = vld [vmem:[%s14] sm:$0xff]
      %v1624 = vld [vmem:[%s14 + $0x8] sm:$0xff]
      %v1625 = vld [vmem:[%s14 + $0x10] sm:$0xff]
      %v1626 = vld [vmem:[%s14 + $0x18] sm:$0xff]
      %1628 = vset.pattern.permute.xlu0 0
      %1629 = vperm.xlu0 %1628, %v1623
      %v1630 = vpop.permute.xlu0 %1629
      %1633 = vset.pattern.permute.xlu0 0
      %1634 = vperm.xlu0 %1633, %v1624
      %v1635 = vpop.permute.xlu0 %1634
      %1638 = vset.pattern.permute.xlu0 0
      %1639 = vperm.xlu0 %1638, %v1625
      %v1640 = vpop.permute.xlu0 %1639
      %1643 = vset.pattern.permute.xlu0 0
      %1644 = vperm.xlu0 %1643, %v1626
      %v1645 = vpop.permute.xlu0 %1644
      %v1647 = vadd.f32 %v1615, %v1630
      %v1648 = vadd.f32 %v1616, %v1630
      %v1649 = vadd.f32 %v1617, %v1635
      %v1650 = vadd.f32 %v1618, %v1635
      %v1651 = vadd.f32 %v1619, %v1640
      %v1652 = vadd.f32 %v1620, %v1640
      %v1653 = vadd.f32 %v1621, %v1645
      %v1654 = vadd.f32 %v1622, %v1645
      %v1655 = vmax.f32 %v1647, 0.0
      %v1656 = vmax.f32 %v1648, 0.0
      %v1657 = vmax.f32 %v1649, 0.0
      %v1658 = vmax.f32 %v1650, 0.0
      %v1659 = vmax.f32 %v1651, 0.0
      %v1660 = vmax.f32 %v1652, 0.0
      %v1661 = vmax.f32 %v1653, 0.0
      %v1662 = vmax.f32 %v1654, 0.0
      %v1663 = vld [vmem:[%s15] sm:$0x3]
      %v1664 = vpack.c.bf16 %v1657, %v1655
      %v1665 = vpack.c.bf16 %v1658, %v1656
      %v1666 = vpack.c.bf16 %v1661, %v1659
      %v1667 = vpack.c.bf16 %v1662, %v1660
      %v1668 = vld [vmem:[%s16] sm:$0x7]
      %1670 = vset.pattern.permute.xlu0 0
      %1671 = vperm.xlu0 %1670, %v1668
      %v1672 = vpop.permute.xlu0 %1671
      %v1675 = vsel %vm979, %v1663, 0
      %1677 = vmatprep.subr.bf16.mxu0 %v1665
      %1678 = vmatpush1.bf16.msra.mxu0 %v1664
      %1679 = vmatprep.subr.bf16.mxu0 %v1667
      %1680 = vmatpush1.bf16.msra.mxu0 %v1666
      %1681 = vmatprep.subr.bf16.mxu0 0
      %1682 = vmatpush1.bf16.msra.mxu0 0
      %1683 = vmatprep.subr.bf16.mxu0 0
      %1684 = vmatpush1.bf16.msra.mxu0 0
      %1685 = vmatprep.subr.bf16.mxu0 0
      %1686 = vmatpush1.bf16.msra.mxu0 0
      %1687 = vmatprep.subr.bf16.mxu0 0
      %1688 = vmatpush1.bf16.msra.mxu0 0
      %1689 = vmatprep.subr.bf16.mxu0 0
      %1690 = vmatpush1.bf16.msra.mxu0 0
      %1691 = vmatprep.subr.bf16.mxu0 0
      %1692 = vmatpush1.bf16.msra.mxu0 0
      %1693 = vmatprep.subr.bf16.mxu0 0
      %1694 = vmatpush1.bf16.msra.mxu0 0
      %1695 = vmatprep.subr.bf16.mxu0 0
      %1696 = vmatpush1.bf16.msra.mxu0 0
      %1697 = vmatprep.subr.bf16.mxu0 0
      %1698 = vmatpush1.bf16.msra.mxu0 0
      %1699 = vmatprep.subr.bf16.mxu0 0
      %1700 = vmatpush1.bf16.msra.mxu0 0
      %1701 = vmatprep.subr.bf16.mxu0 0
      %1702 = vmatpush1.bf16.msra.mxu0 0
      %1703 = vmatprep.subr.bf16.mxu0 0
      %1704 = vmatpush1.bf16.msra.mxu0 0
      %1705 = vmatprep.subr.bf16.mxu0 0
      %1706 = vmatpush1.bf16.msra.mxu0 0
      %1707 = vmatprep.subr.bf16.mxu0 0
      %1708 = vmatpush1.bf16.msra.mxu0 0
      %1709 = vmatprep.mubr.bf16.mxu0 0
      %1710 = vmatmul.mubr.bf16.gmra.mrb[0].mxu0 %v1675
      %v1711 = vpop.f32.mrb[0].mxu0
      %v1712 = vadd.f32 %v1672, %v1711
      %v1713 = vpop.f32.mrb[0].mxu0
      %v1714 = vadd.f32 %v1672, %v1713
      %v1715 = vpop.f32.mrb[0].mxu0
      %v1716 = vpop.f32.mrb[0].mxu0
      %1717 = vdwg.mxu0
      %v1718 = vxor.u32 %v1585, 2147483648
      %v1719 = vxor.u32 %v1587, 2147483648
      %v1720 = vmul.f32 %v1718, 1.442695
      %v1721 = vpow.pop %v1720
      %v1722 = vmul.f32 %v1719, 1.442695
      %v1723 = vpow.pop %v1722
      %v1724 = vadd.f32 %v1721, 1.0
      %v1725 = vadd.f32 %v1723, 1.0
      %v1726 = vrcp.pop %v1724
      %v1727 = vmul.f32 1.0, %v1726
      %v1728 = vrcp.pop %v1725
      %v1729 = vmul.f32 1.0, %v1728
      %v1732 = vrot.slane %v1727, 5
      %v1733 = vrot.slane %v1729, 5
      %vm1736 = vcmask 1042432
      %v1737 = vsel %vm1736, %v1712, %v1732
      %v1738 = vsel %vm1736, %v1714, %v1733
      %v1741 = vcombine.low %v1737, %v1738
      %1743 = vst [vmem:[%s608] sm:$0xff] %v1741
      %s1744 = smul.u32 2, %s35
      %p1745 = scmp.lt.s32.totalorder %s34, 1
      %s1746 = scalar_select %p1745, %s34, 1
      %p1747 = scmp.lt.s32.totalorder %s1744, 3
      %s1748 = scalar_select %p1747, %s1744, 3
      %s1749 = smul.addr %s1746, 4
      %s1750 = sadd.s32 %s1748, %s1749
      %s1751 = smul.addr %s1750, 4
      %s1752 = scalar_lea.vmem %s17, %s1751
      // Predicated region
      $region89: #{scorenet_forward.1} parent=87 // pred_check
        %p1753 = pneg %p431
      $region90: #{scorenet_forward.1} parent=87 // pred_check_branch
        %1755 = sbr.rel (%p1753) target = $region92
      $region91: #{scorenet_forward.1} parent=87 // pred_region
        %s1756 = smul.u32 2, %s35
      $region92: #{scorenet_forward.1} parent=87 // pred_fallthru
        _
    $region88: #{scorenet_forward.1} parent=5 // pred_fallthru
      _
    %p1757 = scmp.le.s32.totalorder 2, %s25
    // Predicated region
    $region93: #{scorenet_forward.1} parent=5 // pred_check
      %p1758 = pneg %p1757
    $region94: #{scorenet_forward.1} parent=5 // pred_check_branch
      %1760 = sbr.rel (%p1758) target = $region96
    $region95: #{scorenet_forward.1} parent=5 // pred_region
      %s1761 = ssub.s32 %s25, 2
      // Predicated region
      $region97: #{scorenet_forward.1} parent=95 // pred_check
        %p1762 = pneg %p437
      $region98: #{scorenet_forward.1} parent=95 // pred_check_branch
        %1764 = sbr.rel (%p1762) target = $region100
      $region99: #{scorenet_forward.1} parent=95 // pred_region
        %s1765 = smul.u32 2, %s37
        %p1766 = scmp.lt.s32.totalorder %s36, 1
        %s1767 = scalar_select %p1766, %s36, 1
        %p1768 = scmp.lt.s32.totalorder %s1765, 3
        %s1769 = scalar_select %p1768, %s1765, 3
        %s1770 = smul.addr %s1767, 4
        %s1771 = sadd.s32 %s1769, %s1770
        %s1772 = smul.addr %s1771, 4
        %s1773 = scalar_lea.vmem %s17, %s1772
      $region100: #{scorenet_forward.1} parent=95 // pred_fallthru
        _
    $region96: #{scorenet_forward.1} parent=5 // pred_fallthru
      _
  $region6: #{scorenet_forward.1} parent=0 // loop_footer
    %s29 = sadd.s32 1, %s25
  $region7: #{scorenet_forward.1} parent=0 // loop_footer_branch
    %24 = sbr.rel target = $region3
  $region8: #{scorenet_forward.1} parent=0 // loop_exit
    _

</llo_original>
